<compile_context>
chip_gen: v5e
topology: v5e:2x2
jax: 0.10.0
libtpu: 0.0.40
codegen_flags: <defaults>
</compile_context>

<pallas_src>
import functools

import jax
import jax.numpy as jnp
from jax.experimental import pallas as pl
from jax.experimental.pallas import tpu as pltpu


# ----------------------------------------------------------------------------
# helpers
# ----------------------------------------------------------------------------
def _round_up(a, m):
    return (a + m - 1) // m * m


def _apply_act(r, act):
    if act == "relu":
        return jnp.maximum(r, 0.0)
    if act == "tanh":
        return jnp.tanh(r)
    if act == "sigmoid":
        return jax.nn.sigmoid(r)
    return r


# ----------------------------------------------------------------------------
# Pallas matmul kernel (the conv hot path): out = act(X @ W + b)
#   X, W are bf16 tiles; accumulation + epilogue in f32, written to the
#   resident f32 output block (no scratch accumulator).
# ----------------------------------------------------------------------------
def _matmul_kernel(x_ref, w_ref, b_ref, o_ref, *, act, k_steps):
    if k_steps == 1:
        r = jnp.dot(x_ref[...], w_ref[...], preferred_element_type=jnp.float32)
        o_ref[...] = _apply_act(r + b_ref[...], act).astype(o_ref.dtype)
    else:
        @pl.when(pl.program_id(2) == 0)
        def _():
            o_ref[...] = jnp.zeros_like(o_ref)

        o_ref[...] += jnp.dot(x_ref[...], w_ref[...],
                              preferred_element_type=jnp.float32)

        @pl.when(pl.program_id(2) == k_steps - 1)
        def _():
            o_ref[...] = _apply_act(o_ref[...] + b_ref[...], act).astype(o_ref.dtype)


def matmul_pallas(x, w, b, act="none"):
    """x:(M,K) f32, w:(K,N) f32, b:(N,) f32  ->  act(x @ w + b) in f32."""
    M, K = x.shape
    _, N = w.shape

    # --- tile selection (small-M regime aware) ------------------------------
    Mpad = _round_up(M, 8)
    if Mpad >= 128:
        TM = 128
        Mpad = _round_up(M, 128)
    else:
        TM = Mpad

    Npad = _round_up(N, 128)
    TN = 128
    for cand in (512, 384, 256, 128):
        if cand <= Npad and Npad % cand == 0:
            TN = cand
            break

    Kpad = _round_up(K, 128)
    TK = 128
    for cand in range(min(Kpad, 2048), 0, -128):
        if Kpad % cand == 0:
            TK = cand
            break
    k_steps = Kpad // TK

    # --- bf16 operands (MXU native), f32 bias / output ----------------------
    xp = jnp.pad(x, ((0, Mpad - M), (0, Kpad - K))).astype(jnp.bfloat16)
    wp = jnp.pad(w, ((0, Kpad - K), (0, Npad - N))).astype(jnp.bfloat16)
    bp = jnp.pad(b, (0, Npad - N)).reshape(1, Npad).astype(jnp.float32)

    kernel = functools.partial(_matmul_kernel, act=act, k_steps=k_steps)

    out = pl.pallas_call(
        kernel,
        out_shape=jax.ShapeDtypeStruct((Mpad, Npad), jnp.float32),
        grid_spec=pltpu.PrefetchScalarGridSpec(
            num_scalar_prefetch=0,
            grid=(Mpad // TM, Npad // TN, k_steps),
            in_specs=[
                pl.BlockSpec((TM, TK), lambda i, j, k: (i, k)),
                pl.BlockSpec((TK, TN), lambda i, j, k: (k, j)),
                pl.BlockSpec((1, TN), lambda i, j, k: (0, j)),
            ],
            out_specs=pl.BlockSpec((TM, TN), lambda i, j, k: (i, j)),
        ),
        compiler_params=pltpu.CompilerParams(
            dimension_semantics=("parallel", "parallel", "arbitrary"),
            vmem_limit_bytes=32 * 1024 * 1024),
    )(xp, wp, bp)
    return out[:M, :N]


# ----------------------------------------------------------------------------
# convolution = im2col (glue) + Pallas matmul with fused BN/bias/activation
# ----------------------------------------------------------------------------
def conv2d(x, w, b, stride=1, padding=0, act="none"):
    """x: NHWC, w: (KH, KW, Cin, Cout), b: (Cout,)."""
    B, H, W, Cin = x.shape
    KH, KW, _, Cout = w.shape
    if padding > 0:
        x = jnp.pad(x, ((0, 0), (padding, padding), (padding, padding), (0, 0)))
    Hp, Wp = x.shape[1], x.shape[2]
    Ho = (Hp - KH) // stride + 1
    Wo = (Wp - KW) // stride + 1

    if KH == 1 and KW == 1 and stride == 1:
        patches = x
    else:
        cols = [x[:, i:i + stride * (Ho - 1) + 1:stride,
                  j:j + stride * (Wo - 1) + 1:stride, :]
                for i in range(KH) for j in range(KW)]
        patches = jnp.concatenate(cols, axis=-1)

    xm = patches.reshape(B * Ho * Wo, KH * KW * Cin)
    wm = w.reshape(KH * KW * Cin, Cout)
    out = matmul_pallas(xm, wm, b, act=act)
    return out.reshape(B, Ho, Wo, Cout)


# ----------------------------------------------------------------------------
# parameters (deterministic) + BatchNorm folding (eval mode, default stats)
# ----------------------------------------------------------------------------
def fold_bn(w, b, gamma, beta, mean, var, eps=1e-5):
    s = gamma / jnp.sqrt(var + eps)
    return w * s, (b - mean) * s + beta


def make_conv_bn(key, kh, kw, cin, cout):
    kw_, kb_ = jax.random.split(key)
    fan_in = kh * kw * cin
    w = jax.random.normal(kw_, (kh, kw, cin, cout), jnp.float32) * (fan_in ** -0.5)
    b = jax.random.normal(kb_, (cout,), jnp.float32) * 0.01
    # BatchNorm2d defaults: gamma=1, beta=0, running_mean=0, running_var=1
    return fold_bn(w, b, jnp.ones(cout), jnp.zeros(cout),
                   jnp.zeros(cout), jnp.ones(cout))


def build_dclayer_params(key, in_channel, outs):
    ksizes = [1, 3, 1, 3, 1]
    chans = [in_channel] + list(outs)
    keys = jax.random.split(key, 5)
    return [make_conv_bn(keys[i], ksizes[i], ksizes[i], chans[i], chans[i + 1])
            for i in range(5)]


# ----------------------------------------------------------------------------
# DClayer forward (matches the PyTorch module's op sequence)
# ----------------------------------------------------------------------------
def dclayer_forward(params, strides, x_nchw):
    x = jnp.transpose(x_nchw, (0, 2, 3, 1))          # NCHW -> NHWC
    pads = [0, 1, 0, 1, 0]
    acts = ["relu", "relu", "relu", "relu", "tanh"]
    for (w, b), s, pad, act in zip(params, strides, pads, acts):
        x = conv2d(x, w, b, stride=s, padding=pad, act=act)
    return jnp.transpose(x, (0, 3, 1, 2))            # NHWC -> NCHW


# ----------------------------------------------------------------------------
# main
# ----------------------------------------------------------------------------
if __name__ == "__main__":
    root = jax.random.PRNGKey(0)
    k_params, k_x = jax.random.split(root)

    in_channel = 64
    outs = [64, 64, 32, 32, 1]
    strides = [1, 1, 1, 1, 1]

    params = build_dclayer_params(k_params, in_channel, outs)
    x = jax.random.normal(k_x, (2, in_channel, 16, 16), jnp.float32)

    fwd = jax.jit(lambda xx: dclayer_forward(params, strides, xx))
    out = fwd(x)
    jax.block_until_ready(out)

    assert out.shape == (2, outs[-1], 16, 16)
    assert bool(jnp.all(jnp.isfinite(out)))
    assert bool(jnp.all(jnp.abs(out) <= 1.0 + 1e-6))   # tanh output range
    print("KERNEL_OK")
</pallas_src>

<mosaic_0001>
module attributes {stable_mosaic.version = 11 : i64} {
  func.func @_matmul_kernel(%arg0: i32, %arg1: i32, %arg2: i32, %arg3: memref<128x128xbf16, #tpu.memory_space<vmem>>, %arg4: memref<128x128xbf16, #tpu.memory_space<vmem>>, %arg5: memref<1x128xf32, #tpu.memory_space<vmem>>, %arg6: memref<128x128xf32, #tpu.memory_space<vmem>>) attributes {dimension_semantics = [#tpu.dimension_semantics<parallel>, #tpu.dimension_semantics<parallel>, #tpu.dimension_semantics<arbitrary>], iteration_bounds = array<i64: 4, 1, 1>, scalar_prefetch = 0 : i64, scratch_operands = 0 : i64, tpu.core_type = #tpu.core_type<tc>, window_params = [{transform_indices = @transform_0, window_bounds = array<i64: 128, 128>}, {transform_indices = @transform_1, window_bounds = array<i64: 128, 128>}, {transform_indices = @transform_2, window_bounds = array<i64: 1, 128>}, {transform_indices = @transform_3, window_bounds = array<i64: 128, 128>}]} {
    %c0 = arith.constant 0 : index
    %c0_0 = arith.constant 0 : index
    %0 = vector.load %arg3[%c0, %c0_0] : memref<128x128xbf16, #tpu.memory_space<vmem>>, vector<128x128xbf16>
    %c0_1 = arith.constant 0 : index
    %c0_2 = arith.constant 0 : index
    %1 = vector.load %arg4[%c0_1, %c0_2] : memref<128x128xbf16, #tpu.memory_space<vmem>>, vector<128x128xbf16>
    %cst = arith.constant dense<0.000000e+00> : vector<128x128xf32>
    %2 = tpu.matmul %0, %1, %cst {dimension_numbers = #tpu.dot_dimension_numbers<[1], [0], [0], [1], [0, 0, 1, 1], [], []>} : vector<128x128xbf16>, vector<128x128xbf16>, vector<128x128xf32> -> vector<128x128xf32>
    %c0_3 = arith.constant 0 : index
    %c0_4 = arith.constant 0 : index
    %3 = vector.load %arg5[%c0_3, %c0_4] : memref<1x128xf32, #tpu.memory_space<vmem>>, vector<1x128xf32>
    %4 = vector.broadcast %3 : vector<1x128xf32> to vector<128x128xf32>
    %5 = arith.addf %2, %4 : vector<128x128xf32>
    %cst_5 = arith.constant 0.000000e+00 : f32
    %6 = vector.broadcast %cst_5 : f32 to vector<128x128xf32>
    %7 = arith.maximumf %5, %6 : vector<128x128xf32>
    %c0_6 = arith.constant 0 : index
    %c0_7 = arith.constant 0 : index
    %8 = vector.load %arg6[%c0_6, %c0_7] : memref<128x128xf32, #tpu.memory_space<vmem>>, vector<128x128xf32>
    tpu.vector_store %arg6[%c0_6, %c0_7], %7 {strides = array<i32>} : memref<128x128xf32, #tpu.memory_space<vmem>>, vector<128x128xf32>,
    return
  }
  func.func @transform_0(%arg0: i32, %arg1: i32, %arg2: i32) -> (i32, i32) {
    %c0_i32 = arith.constant 0 : i32
    return %arg0, %arg2 : i32, i32
  }
  func.func @transform_1(%arg0: i32, %arg1: i32, %arg2: i32) -> (i32, i32) {
    %c0_i32 = arith.constant 0 : i32
    return %arg2, %arg1 : i32, i32
  }
  func.func @transform_2(%arg0: i32, %arg1: i32, %arg2: i32) -> (i32, i32) {
    %c0_i32 = arith.constant 0 : i32
    %c0_i32_0 = arith.constant 0 : i32
    return %c0_i32, %arg1 : i32, i32
  }
  func.func @transform_3(%arg0: i32, %arg1: i32, %arg2: i32) -> (i32, i32) {
    %c0_i32 = arith.constant 0 : i32
    return %arg0, %arg1 : i32, i32
  }
}

module attributes {stable_mosaic.version = 11 : i64} {
  func.func @_matmul_kernel(%arg0: i32, %arg1: i32, %arg2: i32, %arg3: memref<128x640xbf16, #tpu.memory_space<vmem>>, %arg4: memref<640x128xbf16, #tpu.memory_space<vmem>>, %arg5: memref<1x128xf32, #tpu.memory_space<vmem>>, %arg6: memref<128x128xf32, #tpu.memory_space<vmem>>) attributes {dimension_semantics = [#tpu.dimension_semantics<parallel>, #tpu.dimension_semantics<parallel>, #tpu.dimension_semantics<arbitrary>], iteration_bounds = array<i64: 4, 1, 1>, scalar_prefetch = 0 : i64, scratch_operands = 0 : i64, tpu.core_type = #tpu.core_type<tc>, window_params = [{transform_indices = @transform_0, window_bounds = array<i64: 128, 640>}, {transform_indices = @transform_1, window_bounds = array<i64: 640, 128>}, {transform_indices = @transform_2, window_bounds = array<i64: 1, 128>}, {transform_indices = @transform_3, window_bounds = array<i64: 128, 128>}]} {
    %c0 = arith.constant 0 : index
    %c0_0 = arith.constant 0 : index
    %0 = vector.load %arg3[%c0, %c0_0] : memref<128x640xbf16, #tpu.memory_space<vmem>>, vector<128x640xbf16>
    %c0_1 = arith.constant 0 : index
    %c0_2 = arith.constant 0 : index
    %1 = vector.load %arg4[%c0_1, %c0_2] : memref<640x128xbf16, #tpu.memory_space<vmem>>, vector<640x128xbf16>
    %cst = arith.constant dense<0.000000e+00> : vector<128x128xf32>
    %2 = tpu.matmul %0, %1, %cst {dimension_numbers = #tpu.dot_dimension_numbers<[1], [0], [0], [1], [0, 0, 1, 1], [], []>} : vector<128x640xbf16>, vector<640x128xbf16>, vector<128x128xf32> -> vector<128x128xf32>
    %c0_3 = arith.constant 0 : index
    %c0_4 = arith.constant 0 : index
    %3 = vector.load %arg5[%c0_3, %c0_4] : memref<1x128xf32, #tpu.memory_space<vmem>>, vector<1x128xf32>
    %4 = vector.broadcast %3 : vector<1x128xf32> to vector<128x128xf32>
    %5 = arith.addf %2, %4 : vector<128x128xf32>
    %cst_5 = arith.constant 0.000000e+00 : f32
    %6 = vector.broadcast %cst_5 : f32 to vector<128x128xf32>
    %7 = arith.maximumf %5, %6 : vector<128x128xf32>
    %c0_6 = arith.constant 0 : index
    %c0_7 = arith.constant 0 : index
    %8 = vector.load %arg6[%c0_6, %c0_7] : memref<128x128xf32, #tpu.memory_space<vmem>>, vector<128x128xf32>
    tpu.vector_store %arg6[%c0_6, %c0_7], %7 {strides = array<i32>} : memref<128x128xf32, #tpu.memory_space<vmem>>, vector<128x128xf32>,
    return
  }
  func.func @transform_0(%arg0: i32, %arg1: i32, %arg2: i32) -> (i32, i32) {
    %c0_i32 = arith.constant 0 : i32
    return %arg0, %arg2 : i32, i32
  }
  func.func @transform_1(%arg0: i32, %arg1: i32, %arg2: i32) -> (i32, i32) {
    %c0_i32 = arith.constant 0 : i32
    return %arg2, %arg1 : i32, i32
  }
  func.func @transform_2(%arg0: i32, %arg1: i32, %arg2: i32) -> (i32, i32) {
    %c0_i32 = arith.constant 0 : i32
    %c0_i32_0 = arith.constant 0 : i32
    return %c0_i32, %arg1 : i32, i32
  }
  func.func @transform_3(%arg0: i32, %arg1: i32, %arg2: i32) -> (i32, i32) {
    %c0_i32 = arith.constant 0 : i32
    return %arg0, %arg1 : i32, i32
  }
}

module attributes {stable_mosaic.version = 11 : i64} {
  func.func @_matmul_kernel(%arg0: i32, %arg1: i32, %arg2: i32, %arg3: memref<128x384xbf16, #tpu.memory_space<vmem>>, %arg4: memref<384x128xbf16, #tpu.memory_space<vmem>>, %arg5: memref<1x128xf32, #tpu.memory_space<vmem>>, %arg6: memref<128x128xf32, #tpu.memory_space<vmem>>) attributes {dimension_semantics = [#tpu.dimension_semantics<parallel>, #tpu.dimension_semantics<parallel>, #tpu.dimension_semantics<arbitrary>], iteration_bounds = array<i64: 4, 1, 1>, scalar_prefetch = 0 : i64, scratch_operands = 0 : i64, tpu.core_type = #tpu.core_type<tc>, window_params = [{transform_indices = @transform_0, window_bounds = array<i64: 128, 384>}, {transform_indices = @transform_1, window_bounds = array<i64: 384, 128>}, {transform_indices = @transform_2, window_bounds = array<i64: 1, 128>}, {transform_indices = @transform_3, window_bounds = array<i64: 128, 128>}]} {
    %c0 = arith.constant 0 : index
    %c0_0 = arith.constant 0 : index
    %0 = vector.load %arg3[%c0, %c0_0] : memref<128x384xbf16, #tpu.memory_space<vmem>>, vector<128x384xbf16>
    %c0_1 = arith.constant 0 : index
    %c0_2 = arith.constant 0 : index
    %1 = vector.load %arg4[%c0_1, %c0_2] : memref<384x128xbf16, #tpu.memory_space<vmem>>, vector<384x128xbf16>
    %cst = arith.constant dense<0.000000e+00> : vector<128x128xf32>
    %2 = tpu.matmul %0, %1, %cst {dimension_numbers = #tpu.dot_dimension_numbers<[1], [0], [0], [1], [0, 0, 1, 1], [], []>} : vector<128x384xbf16>, vector<384x128xbf16>, vector<128x128xf32> -> vector<128x128xf32>
    %c0_3 = arith.constant 0 : index
    %c0_4 = arith.constant 0 : index
    %3 = vector.load %arg5[%c0_3, %c0_4] : memref<1x128xf32, #tpu.memory_space<vmem>>, vector<1x128xf32>
    %4 = vector.broadcast %3 : vector<1x128xf32> to vector<128x128xf32>
    %5 = arith.addf %2, %4 : vector<128x128xf32>
    %cst_5 = arith.constant 0.000000e+00 : f32
    %6 = vector.broadcast %cst_5 : f32 to vector<128x128xf32>
    %7 = arith.maximumf %5, %6 : vector<128x128xf32>
    %c0_6 = arith.constant 0 : index
    %c0_7 = arith.constant 0 : index
    %8 = vector.load %arg6[%c0_6, %c0_7] : memref<128x128xf32, #tpu.memory_space<vmem>>, vector<128x128xf32>
    tpu.vector_store %arg6[%c0_6, %c0_7], %7 {strides = array<i32>} : memref<128x128xf32, #tpu.memory_space<vmem>>, vector<128x128xf32>,
    return
  }
  func.func @transform_0(%arg0: i32, %arg1: i32, %arg2: i32) -> (i32, i32) {
    %c0_i32 = arith.constant 0 : i32
    return %arg0, %arg2 : i32, i32
  }
  func.func @transform_1(%arg0: i32, %arg1: i32, %arg2: i32) -> (i32, i32) {
    %c0_i32 = arith.constant 0 : i32
    return %arg2, %arg1 : i32, i32
  }
  func.func @transform_2(%arg0: i32, %arg1: i32, %arg2: i32) -> (i32, i32) {
    %c0_i32 = arith.constant 0 : i32
    %c0_i32_0 = arith.constant 0 : i32
    return %c0_i32, %arg1 : i32, i32
  }
  func.func @transform_3(%arg0: i32, %arg1: i32, %arg2: i32) -> (i32, i32) {
    %c0_i32 = arith.constant 0 : i32
    return %arg0, %arg1 : i32, i32
  }
}

module attributes {stable_mosaic.version = 11 : i64} {
  func.func @_matmul_kernel(%arg0: i32, %arg1: i32, %arg2: i32, %arg3: memref<128x128xbf16, #tpu.memory_space<vmem>>, %arg4: memref<128x128xbf16, #tpu.memory_space<vmem>>, %arg5: memref<1x128xf32, #tpu.memory_space<vmem>>, %arg6: memref<128x128xf32, #tpu.memory_space<vmem>>) attributes {dimension_semantics = [#tpu.dimension_semantics<parallel>, #tpu.dimension_semantics<parallel>, #tpu.dimension_semantics<arbitrary>], iteration_bounds = array<i64: 4, 1, 1>, scalar_prefetch = 0 : i64, scratch_operands = 0 : i64, tpu.core_type = #tpu.core_type<tc>, window_params = [{transform_indices = @transform_0, window_bounds = array<i64: 128, 128>}, {transform_indices = @transform_1, window_bounds = array<i64: 128, 128>}, {transform_indices = @transform_2, window_bounds = array<i64: 1, 128>}, {transform_indices = @transform_3, window_bounds = array<i64: 128, 128>}]} {
    %c0 = arith.constant 0 : index
    %c0_0 = arith.constant 0 : index
    %0 = vector.load %arg3[%c0, %c0_0] : memref<128x128xbf16, #tpu.memory_space<vmem>>, vector<128x128xbf16>
    %c0_1 = arith.constant 0 : index
    %c0_2 = arith.constant 0 : index
    %1 = vector.load %arg4[%c0_1, %c0_2] : memref<128x128xbf16, #tpu.memory_space<vmem>>, vector<128x128xbf16>
    %cst = arith.constant dense<0.000000e+00> : vector<128x128xf32>
    %2 = tpu.matmul %0, %1, %cst {dimension_numbers = #tpu.dot_dimension_numbers<[1], [0], [0], [1], [0, 0, 1, 1], [], []>} : vector<128x128xbf16>, vector<128x128xbf16>, vector<128x128xf32> -> vector<128x128xf32>
    %c0_3 = arith.constant 0 : index
    %c0_4 = arith.constant 0 : index
    %3 = vector.load %arg5[%c0_3, %c0_4] : memref<1x128xf32, #tpu.memory_space<vmem>>, vector<1x128xf32>
    %4 = vector.broadcast %3 : vector<1x128xf32> to vector<128x128xf32>
    %5 = arith.addf %2, %4 : vector<128x128xf32>
    %6 = math.tanh %5 : vector<128x128xf32>
    %c0_5 = arith.constant 0 : index
    %c0_6 = arith.constant 0 : index
    %7 = vector.load %arg6[%c0_5, %c0_6] : memref<128x128xf32, #tpu.memory_space<vmem>>, vector<128x128xf32>
    tpu.vector_store %arg6[%c0_5, %c0_6], %6 {strides = array<i32>} : memref<128x128xf32, #tpu.memory_space<vmem>>, vector<128x128xf32>,
    return
  }
  func.func @transform_0(%arg0: i32, %arg1: i32, %arg2: i32) -> (i32, i32) {
    %c0_i32 = arith.constant 0 : i32
    return %arg0, %arg2 : i32, i32
  }
  func.func @transform_1(%arg0: i32, %arg1: i32, %arg2: i32) -> (i32, i32) {
    %c0_i32 = arith.constant 0 : i32
    return %arg2, %arg1 : i32, i32
  }
  func.func @transform_2(%arg0: i32, %arg1: i32, %arg2: i32) -> (i32, i32) {
    %c0_i32 = arith.constant 0 : i32
    %c0_i32_0 = arith.constant 0 : i32
    return %c0_i32, %arg1 : i32, i32
  }
  func.func @transform_3(%arg0: i32, %arg1: i32, %arg2: i32) -> (i32, i32) {
    %c0_i32 = arith.constant 0 : i32
    return %arg0, %arg1 : i32, i32
  }
}

</mosaic_0001>

<llo_original>
// kernel: _lambda_.5
$region0: #{_lambda_.5}
  #allocation0 [shape = 'u32[]', space=smem, size = 0x4, offset = 0x4, fixed_abs, tag = 'smem constant byte address 0x4 - core index']
  #allocation1 [shape = 'u32[72,128]{1,0:T(1,128)}', space=vmem, size = 0x9000, scoped, tag = 'internal scratch']
  %s0 = inlined_call_operand.vmem [shape: bf16[512,128], index: 0, kind: input, shape index: {}]
  %s1 = inlined_call_operand.vmem [shape: bf16[128,128], index: 1, kind: input, shape index: {}]
  %s2 = inlined_call_operand.vmem [shape: f32[1,128], index: 2, kind: input, shape index: {}]
  %s3 = inlined_call_operand.vmem [shape: f32[512,128], index: 3, kind: output, shape index: {}]
  %s4 = sld [smem:[#allocation0]]
  $region45: #{_lambda_.5} parent=0
    _
  %s6 = ssub.s32 1, %s4
  %s7 = scalar_select 0, %s6, %s4
  loop: start=0, step=1, limit=6
  $region2: #{_lambda_.5} parent=0 // loop_pre_header
    _
  $region3: #{_lambda_.5} parent=0 // loop_header
    %s9 = sphi 0, %s13
    %p10 = scmp.ge.s32.totalorder %s9, 6
    %s16 = sphi 0, %s35
    %s17 = sphi 0, %s31
    %s18 = sphi 0, %s27
    %s19 = sphi 0, %s16
    %s20 = sphi 0, %s17
    %s21 = sphi 0, %s18
    %s22 = sphi 0, %s19
    %s23 = sphi 0, %s20
    %s24 = sphi 0, %s21
    %s40 = sphi 0, %s42
    %s43 = sphi 0, %s40
    %s44 = sphi 0, %s43
    %s60 = sphi 0, %s44
    %s68 = sphi 0, %s70
    %s71 = sphi 0, %s68
    %s72 = sphi 0, %s71
    %s88 = sphi 0, %s72
    %s94 = sphi 0, %s96
    %s97 = sphi 0, %s94
    %s98 = sphi 0, %s97
    %s114 = sphi 0, %s98
    %s122 = sphi 0, %s124
    %s125 = sphi 0, %s122
    %s126 = sphi 0, %s125
    %s142 = sphi 0, %s126
  $region4: #{_lambda_.5} parent=0 // loop_header_branch
    %12 = sbr.rel (%p10) target = $region8
  $region5: #{_lambda_.5} parent=0 // loop_body
    %s14 = ssub.s32 %s9, 1
    %s15 = ssub.s32 %s9, 2
    %s25 = sadd.s32 1, %s18
    %p26 = scmp.ge.s32.totalorder %s25, 1
    %s27 = scalar_select %p26, 0, %s25
    %s28 = sadd.s32 1, %s17
    %s29 = scalar_select %p26, %s28, %s17
    %p30 = scmp.ge.s32.totalorder %s29, 1
    %s31 = scalar_select %p30, 0, %s29
    %s32 = sadd.s32 1, %s16
    %s33 = scalar_select %p30, %s32, %s16
    %p34 = scmp.ge.s32.totalorder %s33, 4
    %s35 = scalar_select %p34, 0, %s33
    %s36 = ssub.s32 %s16, %s35
    %s37 = ssub.s32 %s18, %s27
    %s38 = sor.u32 %s36, %s37
    %p39 = scmp.eq.s32.totalorder %s38, 0
    %s41 = sadd.s32 %s40, 1
    %s42 = scalar_select %p39, %s40, %s41
    %p45 = pneg %p39
    %p46 = scmp.eq.s32.totalorder %s9, 3
    %p47 = por %p45, %p46
    %p48 = scmp.ne.s32.totalorder %s40, %s43
    %p49 = scmp.eq.s32.totalorder %s9, 0
    %p50 = por %p48, %p49
    %p51 = scmp.ne.s32.totalorder %s40, %s43
    %p52 = scmp.eq.s32.totalorder %s14, 3
    %p53 = por %p51, %p52
    %p54 = scmp.ne.s32.totalorder %s43, %s44
    %p55 = scmp.eq.s32.totalorder %s14, 0
    %p56 = por %p54, %p55
    %p57 = scmp.ne.s32.totalorder %s43, %s44
    %p58 = scmp.eq.s32.totalorder %s15, 3
    %p59 = por %p57, %p58
    %p61 = scmp.ne.s32.totalorder %s44, %s60
    %p62 = scmp.eq.s32.totalorder %s15, 0
    %p63 = por %p61, %p62
    %s64 = ssub.s32 %s18, %s27
    %s65 = ssub.s32 %s17, %s31
    %s66 = sor.u32 %s64, %s65
    %p67 = scmp.eq.s32.totalorder %s66, 0
    %s69 = sadd.s32 %s68, 1
    %s70 = scalar_select %p67, %s68, %s69
    %p73 = pneg %p67
    %p74 = scmp.eq.s32.totalorder %s9, 3
    %p75 = por %p73, %p74
    %p76 = scmp.ne.s32.totalorder %s68, %s71
    %p77 = scmp.eq.s32.totalorder %s9, 0
    %p78 = por %p76, %p77
    %p79 = scmp.ne.s32.totalorder %s68, %s71
    %p80 = scmp.eq.s32.totalorder %s14, 3
    %p81 = por %p79, %p80
    %p82 = scmp.ne.s32.totalorder %s71, %s72
    %p83 = scmp.eq.s32.totalorder %s14, 0
    %p84 = por %p82, %p83
    %p85 = scmp.ne.s32.totalorder %s71, %s72
    %p86 = scmp.eq.s32.totalorder %s15, 3
    %p87 = por %p85, %p86
    %p89 = scmp.ne.s32.totalorder %s72, %s88
    %p90 = scmp.eq.s32.totalorder %s15, 0
    %p91 = por %p89, %p90
    %s92 = ssub.s32 %s17, %s31
    %p93 = scmp.eq.s32.totalorder %s92, 0
    %s95 = sadd.s32 %s94, 1
    %s96 = scalar_select %p93, %s94, %s95
    %p99 = pneg %p93
    %p100 = scmp.eq.s32.totalorder %s9, 3
    %p101 = por %p99, %p100
    %p102 = scmp.ne.s32.totalorder %s94, %s97
    %p103 = scmp.eq.s32.totalorder %s9, 0
    %p104 = por %p102, %p103
    %p105 = scmp.ne.s32.totalorder %s94, %s97
    %p106 = scmp.eq.s32.totalorder %s14, 3
    %p107 = por %p105, %p106
    %p108 = scmp.ne.s32.totalorder %s97, %s98
    %p109 = scmp.eq.s32.totalorder %s14, 0
    %p110 = por %p108, %p109
    %p111 = scmp.ne.s32.totalorder %s97, %s98
    %p112 = scmp.eq.s32.totalorder %s15, 3
    %p113 = por %p111, %p112
    %p115 = scmp.ne.s32.totalorder %s98, %s114
    %p116 = scmp.eq.s32.totalorder %s15, 0
    %p117 = por %p115, %p116
    %s118 = ssub.s32 %s16, %s35
    %s119 = ssub.s32 %s17, %s31
    %s120 = sor.u32 %s118, %s119
    %p121 = scmp.eq.s32.totalorder %s120, 0
    %s123 = sadd.s32 %s122, 1
    %s124 = scalar_select %p121, %s122, %s123
    %p127 = pneg %p121
    %p128 = scmp.eq.s32.totalorder %s9, 3
    %p129 = por %p127, %p128
    %p130 = scmp.ne.s32.totalorder %s122, %s125
    %p131 = scmp.eq.s32.totalorder %s9, 0
    %p132 = por %p130, %p131
    %p133 = scmp.ne.s32.totalorder %s122, %s125
    %p134 = scmp.eq.s32.totalorder %s14, 3
    %p135 = por %p133, %p134
    %p136 = scmp.ne.s32.totalorder %s125, %s126
    %p137 = scmp.eq.s32.totalorder %s14, 0
    %p138 = por %p136, %p137
    %p139 = scmp.ne.s32.totalorder %s125, %s126
    %p140 = scmp.eq.s32.totalorder %s15, 3
    %p141 = por %p139, %p140
    %p143 = scmp.ne.s32.totalorder %s126, %s142
    %p144 = scmp.eq.s32.totalorder %s15, 0
    %p145 = por %p143, %p144
    %p146 = scmp.le.s32.totalorder 1, %s9
    %p147 = scmp.lt.s32.totalorder %s9, 5
    %p148 = pnand %p146, %p147
    %p149 = pneg %p148
    // Predicated region
    $region9: #{_lambda_.5} parent=5 // pred_check
      _
    $region10: #{_lambda_.5} parent=5 // pred_check_branch
      %151 = sbr.rel (%p148) target = $region12
    $region11: #{_lambda_.5} parent=5 // pred_region
      %s152 = ssub.s32 %s9, 1
      // Predicated region
      $region13: #{_lambda_.5} parent=11 // pred_check
        %p153 = pneg %p84
      $region14: #{_lambda_.5} parent=11 // pred_check_branch
        %155 = sbr.rel (%p153) target = $region16
      $region15: #{_lambda_.5} parent=11 // pred_region
        %s156 = smul.u32 16, %s21
        %p157 = scmp.lt.s32.totalorder %s156, 15
        %s158 = scalar_select %p157, %s156, 15
        %p159 = scmp.lt.s32.totalorder %s20, 0
        %s160 = scalar_select %p159, %s20, 0
        %s161 = sadd.s32 %s160, %s158
        %s162 = smul.addr %s161, 4
        %s163 = scalar_lea.vmem %s1, %s162
        %s164 = smul.u32 16, %s21
      $region16: #{_lambda_.5} parent=11 // pred_fallthru
        _
      // Predicated region
      $region17: #{_lambda_.5} parent=11 // pred_check
        %p165 = pneg %p110
      $region18: #{_lambda_.5} parent=11 // pred_check_branch
        %167 = sbr.rel (%p165) target = $region20
      $region19: #{_lambda_.5} parent=11 // pred_region
        %p168 = scmp.lt.s32.totalorder %s20, 0
        %s169 = scalar_select %p168, %s20, 0
        %s170 = scalar_lea.vmem %s2, %s169
      $region20: #{_lambda_.5} parent=11 // pred_fallthru
        _
    $region12: #{_lambda_.5} parent=5 // pred_fallthru
      _
    %p171 = scmp.lt.s32.totalorder %s9, 4
    // Predicated region
    $region21: #{_lambda_.5} parent=5 // pred_check
      %p172 = pneg %p171
    $region22: #{_lambda_.5} parent=5 // pred_check_branch
      %174 = sbr.rel (%p172) target = $region24
    $region23: #{_lambda_.5} parent=5 // pred_region
      // Predicated region
      $region25: #{_lambda_.5} parent=23 // pred_check
        %p175 = pneg %p50
      $region26: #{_lambda_.5} parent=23 // pred_check_branch
        %177 = sbr.rel (%p175) target = $region28
      $region27: #{_lambda_.5} parent=23 // pred_region
        %s178 = smul.u32 16, %s16
        %p179 = scmp.lt.s32.totalorder %s178, 63
        %s180 = scalar_select %p179, %s178, 63
        %p181 = scmp.lt.s32.totalorder %s18, 0
        %s182 = scalar_select %p181, %s18, 0
        %s183 = sadd.s32 %s182, %s180
        %s184 = smul.addr %s183, 4
        %s185 = scalar_lea.vmem %s0, %s184
        %s186 = smul.u32 16, %s16
      $region28: #{_lambda_.5} parent=23 // pred_fallthru
        _
    $region24: #{_lambda_.5} parent=5 // pred_fallthru
      _
    %p187 = scmp.le.s32.totalorder 1, %s9
    %p188 = scmp.lt.s32.totalorder %s9, 5
    %p189 = pnand %p187, %p188
    %p190 = pneg %p189
    // Predicated region
    $region29: #{_lambda_.5} parent=5 // pred_check
      _
    $region30: #{_lambda_.5} parent=5 // pred_check_branch
      %192 = sbr.rel (%p189) target = $region32
    $region31: #{_lambda_.5} parent=5 // pred_region
      %s193 = ssub.s32 %s9, 1
      %s194 = smul.u32 16, %s19
      %p195 = scmp.lt.s32.totalorder %s194, 63
      %s196 = scalar_select %p195, %s194, 63
      %p197 = scmp.lt.s32.totalorder %s21, 0
      %s198 = scalar_select %p197, %s21, 0
      %s199 = sadd.s32 %s198, %s196
      %s200 = smul.addr %s199, 4
      %s201 = scalar_lea.vmem %s0, %s200
      %p202 = pneg %p56
      %p203 = pneg %p53
      %s204 = smul.u32 16, %s21
      %p205 = scmp.lt.s32.totalorder %s204, 15
      %s206 = scalar_select %p205, %s204, 15
      %p207 = scmp.lt.s32.totalorder %s20, 0
      %s208 = scalar_select %p207, %s20, 0
      %s209 = sadd.s32 %s208, %s206
      %s210 = smul.addr %s209, 4
      %s211 = scalar_lea.vmem %s1, %s210
      %p212 = pneg %p84
      %p213 = pneg %p81
      %p214 = scmp.lt.s32.totalorder %s20, 0
      %s215 = scalar_select %p214, %s20, 0
      %s216 = scalar_lea.vmem %s2, %s215
      %p217 = pneg %p110
      %p218 = pneg %p107
      %p219 = pneg %p138
      %p220 = pneg %p135
      %s221 = smul.u32 16, %s19
      %p222 = scmp.lt.s32.totalorder %s221, 63
      %s223 = scalar_select %p222, %s221, 63
      %p224 = scmp.lt.s32.totalorder %s20, 0
      %s225 = scalar_select %p224, %s20, 0
      %s226 = sadd.s32 %s225, %s223
      %s227 = smul.addr %s226, 8
      %s228 = scalar_lea.vmem %s3, %s227
      %s229 = smul.u32 16, %s19
      %p230 = scmp.lt.s32.totalorder %s229, 63
      %s231 = scalar_select %p230, %s229, 63
      %p232 = scmp.lt.s32.totalorder %s21, 0
      %s233 = scalar_select %p232, %s21, 0
      %s234 = sadd.s32 %s233, %s231
      %s235 = smul.addr %s234, 4
      %s236 = scalar_lea.vmem %s0, %s235
      %s237 = smul.u32 16, %s19
      %s238 = smul.u32 16, %s21
      %p239 = scmp.lt.s32.totalorder %s238, 15
      %s240 = scalar_select %p239, %s238, 15
      %p241 = scmp.lt.s32.totalorder %s20, 0
      %s242 = scalar_select %p241, %s20, 0
      %s243 = sadd.s32 %s242, %s240
      %s244 = smul.addr %s243, 4
      %s245 = scalar_lea.vmem %s1, %s244
      %s246 = smul.u32 16, %s21
      %p247 = scmp.lt.s32.totalorder %s20, 0
      %s248 = scalar_select %p247, %s20, 0
      %s249 = scalar_lea.vmem %s2, %s248
      %s250 = smul.u32 16, %s19
      %p251 = scmp.lt.s32.totalorder %s250, 63
      %s252 = scalar_select %p251, %s250, 63
      %p253 = scmp.lt.s32.totalorder %s20, 0
      %s254 = scalar_select %p253, %s20, 0
      %s255 = sadd.s32 %s254, %s252
      %s256 = smul.addr %s255, 8
      %s257 = scalar_lea.vmem %s3, %s256
      %s258 = smul.u32 16, %s19
      %v259 = vld [vmem:[%s236] sm:$0xf]
      %v260 = vld [vmem:[%s236 + $0x4] sm:$0xf]
      %v261 = vld [vmem:[%s236 + $0x8] sm:$0xf]
      %v262 = vld [vmem:[%s236 + $0xc] sm:$0xf]
      %v263 = vld [vmem:[%s236 + $0x10] sm:$0xf]
      %v264 = vld [vmem:[%s236 + $0x14] sm:$0xf]
      %v265 = vld [vmem:[%s236 + $0x18] sm:$0xf]
      %v266 = vld [vmem:[%s236 + $0x1c] sm:$0xf]
      %v267 = vld [vmem:[%s236 + $0x20] sm:$0xf]
      %v268 = vld [vmem:[%s236 + $0x24] sm:$0xf]
      %v269 = vld [vmem:[%s236 + $0x28] sm:$0xf]
      %v270 = vld [vmem:[%s236 + $0x2c] sm:$0xf]
      %v271 = vld [vmem:[%s236 + $0x30] sm:$0xf]
      %v272 = vld [vmem:[%s236 + $0x34] sm:$0xf]
      %v273 = vld [vmem:[%s236 + $0x38] sm:$0xf]
      %v274 = vld [vmem:[%s236 + $0x3c] sm:$0xf]
      %v275 = vld [vmem:[%s245] sm:$0xf]
      %v276 = vld [vmem:[%s245 + $0x4] sm:$0xf]
      %v277 = vld [vmem:[%s245 + $0x8] sm:$0xf]
      %v278 = vld [vmem:[%s245 + $0xc] sm:$0xf]
      %v279 = vld [vmem:[%s245 + $0x10] sm:$0xf]
      %v280 = vld [vmem:[%s245 + $0x14] sm:$0xf]
      %v281 = vld [vmem:[%s245 + $0x18] sm:$0xf]
      %v282 = vld [vmem:[%s245 + $0x1c] sm:$0xf]
      %v283 = vld [vmem:[%s245 + $0x20] sm:$0xf]
      %v284 = vld [vmem:[%s245 + $0x24] sm:$0xf]
      %v285 = vld [vmem:[%s245 + $0x28] sm:$0xf]
      %v286 = vld [vmem:[%s245 + $0x2c] sm:$0xf]
      %v287 = vld [vmem:[%s245 + $0x30] sm:$0xf]
      %v288 = vld [vmem:[%s245 + $0x34] sm:$0xf]
      %v289 = vld [vmem:[%s245 + $0x38] sm:$0xf]
      %v290 = vld [vmem:[%s245 + $0x3c] sm:$0xf]
      %v291 = vld [vmem:[%s249] sm:$0x1]
      %v293 = vperm.slane %v291, 0
      %v311 = vunpack.c.l.b16 %v259
      %v312 = vunpack.c.l.b16 %v260
      %v313 = vunpack.c.l.b16 %v261
      %v314 = vunpack.c.l.b16 %v262
      %v315 = vunpack.c.l.b16 %v263
      %v316 = vunpack.c.l.b16 %v264
      %v317 = vunpack.c.l.b16 %v265
      %v318 = vunpack.c.l.b16 %v266
      %v319 = vunpack.c.l.b16 %v267
      %v320 = vunpack.c.l.b16 %v268
      %v321 = vunpack.c.l.b16 %v269
      %v322 = vunpack.c.l.b16 %v270
      %v323 = vunpack.c.l.b16 %v271
      %v324 = vunpack.c.l.b16 %v272
      %v325 = vunpack.c.l.b16 %v273
      %v326 = vunpack.c.l.b16 %v274
      %v327 = vpack.c.b16 %v312, %v311
      %v328 = vpack.c.b16 %v314, %v313
      %v329 = vpack.c.b16 %v316, %v315
      %v330 = vpack.c.b16 %v318, %v317
      %v331 = vpack.c.b16 %v320, %v319
      %v332 = vpack.c.b16 %v322, %v321
      %v333 = vpack.c.b16 %v324, %v323
      %v334 = vpack.c.b16 %v326, %v325
      %v359 = vunpack.c.l.b16 %v275
      %v360 = vunpack.c.l.b16 %v276
      %v361 = vunpack.c.l.b16 %v277
      %v362 = vunpack.c.l.b16 %v278
      %v363 = vunpack.c.l.b16 %v279
      %v364 = vunpack.c.l.b16 %v280
      %v365 = vunpack.c.l.b16 %v281
      %v366 = vunpack.c.l.b16 %v282
      %v367 = vunpack.c.l.b16 %v283
      %v368 = vunpack.c.l.b16 %v284
      %v369 = vunpack.c.l.b16 %v285
      %v370 = vunpack.c.l.b16 %v286
      %v371 = vunpack.c.l.b16 %v287
      %v372 = vunpack.c.l.b16 %v288
      %v373 = vunpack.c.l.b16 %v289
      %v374 = vunpack.c.l.b16 %v290
      %v375 = vpack.c.b16 %v360, %v359
      %v376 = vpack.c.b16 %v362, %v361
      %v377 = vpack.c.b16 %v364, %v363
      %v378 = vpack.c.b16 %v366, %v365
      %v379 = vpack.c.b16 %v368, %v367
      %v380 = vpack.c.b16 %v370, %v369
      %v381 = vpack.c.b16 %v372, %v371
      %v382 = vpack.c.b16 %v374, %v373
      %391 = vmatpush.bf16.msra.mxu0 %v382
      %392 = vmatpush.bf16.msra.mxu0 %v381
      %393 = vmatpush.bf16.msra.mxu0 %v380
      %394 = vmatpush.bf16.msra.mxu0 %v379
      %395 = vmatpush.bf16.msra.mxu0 %v378
      %396 = vmatpush.bf16.msra.mxu0 %v377
      %397 = vmatpush.bf16.msra.mxu0 %v376
      %398 = vmatpush.bf16.msra.mxu0 %v375
      %399 = vmatmul.bf16.gmra.mxu0 %v327
      %v400 = vpop.f32.mrf.mxu0
      %v401 = vadd.f32 %v293, %v400
      %v402 = vpop.f32.mrf.mxu0
      %v403 = vadd.f32 %v293, %v402
      %404 = vmatmul.bf16.gmra.mxu0 %v328
      %v405 = vpop.f32.mrf.mxu0
      %v406 = vadd.f32 %v293, %v405
      %v407 = vpop.f32.mrf.mxu0
      %v408 = vadd.f32 %v293, %v407
      %409 = vmatmul.bf16.gmra.mxu0 %v329
      %v410 = vpop.f32.mrf.mxu0
      %v411 = vadd.f32 %v293, %v410
      %v412 = vpop.f32.mrf.mxu0
      %v413 = vadd.f32 %v293, %v412
      %414 = vmatmul.bf16.gmra.mxu0 %v330
      %v415 = vpop.f32.mrf.mxu0
      %v416 = vadd.f32 %v293, %v415
      %v417 = vpop.f32.mrf.mxu0
      %v418 = vadd.f32 %v293, %v417
      %419 = vmatmul.bf16.gmra.mxu0 %v331
      %v420 = vpop.f32.mrf.mxu0
      %v421 = vadd.f32 %v293, %v420
      %v422 = vpop.f32.mrf.mxu0
      %v423 = vadd.f32 %v293, %v422
      %424 = vmatmul.bf16.gmra.mxu0 %v332
      %v425 = vpop.f32.mrf.mxu0
      %v426 = vadd.f32 %v293, %v425
      %v427 = vpop.f32.mrf.mxu0
      %v428 = vadd.f32 %v293, %v427
      %429 = vmatmul.bf16.gmra.mxu0 %v333
      %v430 = vpop.f32.mrf.mxu0
      %v431 = vadd.f32 %v293, %v430
      %v432 = vpop.f32.mrf.mxu0
      %v433 = vadd.f32 %v293, %v432
      %434 = vmatmul.bf16.gmra.mxu0 %v334
      %v435 = vpop.f32.mrf.mxu0
      %v436 = vadd.f32 %v293, %v435
      %v437 = vpop.f32.mrf.mxu0
      %v438 = vadd.f32 %v293, %v437
      %439 = vdwg.mxu0
      %v440 = vmax.f32 %v401, 0.0
      %v441 = vmax.f32 %v403, 0.0
      %v442 = vmax.f32 %v406, 0.0
      %v443 = vmax.f32 %v408, 0.0
      %v444 = vmax.f32 %v411, 0.0
      %v445 = vmax.f32 %v413, 0.0
      %v446 = vmax.f32 %v416, 0.0
      %v447 = vmax.f32 %v418, 0.0
      %v448 = vmax.f32 %v421, 0.0
      %v449 = vmax.f32 %v423, 0.0
      %v450 = vmax.f32 %v426, 0.0
      %v451 = vmax.f32 %v428, 0.0
      %v452 = vmax.f32 %v431, 0.0
      %v453 = vmax.f32 %v433, 0.0
      %v454 = vmax.f32 %v436, 0.0
      %v455 = vmax.f32 %v438, 0.0
      %456 = vst [vmem:[%s257] sm:$0xff] %v440
      %457 = vst [vmem:[%s257 + $0x8] sm:$0xff] %v441
      %458 = vst [vmem:[%s257 + $0x10] sm:$0xff] %v442
      %459 = vst [vmem:[%s257 + $0x18] sm:$0xff] %v443
      %460 = vst [vmem:[%s257 + $0x20] sm:$0xff] %v444
      %461 = vst [vmem:[%s257 + $0x28] sm:$0xff] %v445
      %462 = vst [vmem:[%s257 + $0x30] sm:$0xff] %v446
      %463 = vst [vmem:[%s257 + $0x38] sm:$0xff] %v447
      %464 = vst [vmem:[%s257 + $0x40] sm:$0xff] %v448
      %465 = vst [vmem:[%s257 + $0x48] sm:$0xff] %v449
      %466 = vst [vmem:[%s257 + $0x50] sm:$0xff] %v450
      %467 = vst [vmem:[%s257 + $0x58] sm:$0xff] %v451
      %468 = vst [vmem:[%s257 + $0x60] sm:$0xff] %v452
      %469 = vst [vmem:[%s257 + $0x68] sm:$0xff] %v453
      %470 = vst [vmem:[%s257 + $0x70] sm:$0xff] %v454
      %471 = vst [vmem:[%s257 + $0x78] sm:$0xff] %v455
      %s472 = smul.u32 16, %s19
      %p473 = scmp.lt.s32.totalorder %s472, 63
      %s474 = scalar_select %p473, %s472, 63
      %p475 = scmp.lt.s32.totalorder %s20, 0
      %s476 = scalar_select %p475, %s20, 0
      %s477 = sadd.s32 %s476, %s474
      %s478 = smul.addr %s477, 8
      %s479 = scalar_lea.vmem %s3, %s478
      // Predicated region
      $region33: #{_lambda_.5} parent=31 // pred_check
        %p480 = pneg %p135
      $region34: #{_lambda_.5} parent=31 // pred_check_branch
        %482 = sbr.rel (%p480) target = $region36
      $region35: #{_lambda_.5} parent=31 // pred_region
        %s483 = smul.u32 16, %s19
      $region36: #{_lambda_.5} parent=31 // pred_fallthru
        _
    $region32: #{_lambda_.5} parent=5 // pred_fallthru
      _
    %p484 = scmp.le.s32.totalorder 2, %s9
    // Predicated region
    $region37: #{_lambda_.5} parent=5 // pred_check
      %p485 = pneg %p484
    $region38: #{_lambda_.5} parent=5 // pred_check_branch
      %487 = sbr.rel (%p485) target = $region40
    $region39: #{_lambda_.5} parent=5 // pred_region
      %s488 = ssub.s32 %s9, 2
      // Predicated region
      $region41: #{_lambda_.5} parent=39 // pred_check
        %p489 = pneg %p141
      $region42: #{_lambda_.5} parent=39 // pred_check_branch
        %491 = sbr.rel (%p489) target = $region44
      $region43: #{_lambda_.5} parent=39 // pred_region
        %s492 = smul.u32 16, %s22
        %p493 = scmp.lt.s32.totalorder %s492, 63
        %s494 = scalar_select %p493, %s492, 63
        %p495 = scmp.lt.s32.totalorder %s23, 0
        %s496 = scalar_select %p495, %s23, 0
        %s497 = sadd.s32 %s496, %s494
        %s498 = smul.addr %s497, 8
        %s499 = scalar_lea.vmem %s3, %s498
      $region44: #{_lambda_.5} parent=39 // pred_fallthru
        _
    $region40: #{_lambda_.5} parent=5 // pred_fallthru
      _
  $region6: #{_lambda_.5} parent=0 // loop_footer
    %s13 = sadd.s32 1, %s9
  $region7: #{_lambda_.5} parent=0 // loop_footer_branch
    %8 = sbr.rel target = $region3
  $region8: #{_lambda_.5} parent=0 // loop_exit
    _

// kernel: _lambda_.6
$region0: #{_lambda_.6}
  #allocation0 [shape = 'u32[]', space=smem, size = 0x4, offset = 0x4, fixed_abs, tag = 'smem constant byte address 0x4 - core index']
  #allocation1 [shape = 'u32[72,128]{1,0:T(1,128)}', space=vmem, size = 0x9000, scoped, tag = 'internal scratch']
  %s0 = inlined_call_operand.vmem [shape: bf16[512,640], index: 0, kind: input, shape index: {}]
  %s1 = inlined_call_operand.vmem [shape: bf16[640,128], index: 1, kind: input, shape index: {}]
  %s2 = inlined_call_operand.vmem [shape: f32[1,128], index: 2, kind: input, shape index: {}]
  %s3 = inlined_call_operand.vmem [shape: f32[512,128], index: 3, kind: output, shape index: {}]
  %s4 = sld [smem:[#allocation0]]
  $region45: #{_lambda_.6} parent=0
    _
  %s6 = ssub.s32 1, %s4
  %s7 = scalar_select 0, %s6, %s4
  loop: start=0, step=1, limit=6
  $region2: #{_lambda_.6} parent=0 // loop_pre_header
    _
  $region3: #{_lambda_.6} parent=0 // loop_header
    %s9 = sphi 0, %s13
    %p10 = scmp.ge.s32.totalorder %s9, 6
    %s16 = sphi 0, %s35
    %s17 = sphi 0, %s31
    %s18 = sphi 0, %s27
    %s19 = sphi 0, %s16
    %s20 = sphi 0, %s17
    %s21 = sphi 0, %s18
    %s22 = sphi 0, %s19
    %s23 = sphi 0, %s20
    %s24 = sphi 0, %s21
    %s40 = sphi 0, %s42
    %s43 = sphi 0, %s40
    %s44 = sphi 0, %s43
    %s60 = sphi 0, %s44
    %s68 = sphi 0, %s70
    %s71 = sphi 0, %s68
    %s72 = sphi 0, %s71
    %s88 = sphi 0, %s72
    %s94 = sphi 0, %s96
    %s97 = sphi 0, %s94
    %s98 = sphi 0, %s97
    %s114 = sphi 0, %s98
    %s122 = sphi 0, %s124
    %s125 = sphi 0, %s122
    %s126 = sphi 0, %s125
    %s142 = sphi 0, %s126
  $region4: #{_lambda_.6} parent=0 // loop_header_branch
    %12 = sbr.rel (%p10) target = $region8
  $region5: #{_lambda_.6} parent=0 // loop_body
    %s14 = ssub.s32 %s9, 1
    %s15 = ssub.s32 %s9, 2
    %s25 = sadd.s32 1, %s18
    %p26 = scmp.ge.s32.totalorder %s25, 1
    %s27 = scalar_select %p26, 0, %s25
    %s28 = sadd.s32 1, %s17
    %s29 = scalar_select %p26, %s28, %s17
    %p30 = scmp.ge.s32.totalorder %s29, 1
    %s31 = scalar_select %p30, 0, %s29
    %s32 = sadd.s32 1, %s16
    %s33 = scalar_select %p30, %s32, %s16
    %p34 = scmp.ge.s32.totalorder %s33, 4
    %s35 = scalar_select %p34, 0, %s33
    %s36 = ssub.s32 %s16, %s35
    %s37 = ssub.s32 %s18, %s27
    %s38 = sor.u32 %s36, %s37
    %p39 = scmp.eq.s32.totalorder %s38, 0
    %s41 = sadd.s32 %s40, 1
    %s42 = scalar_select %p39, %s40, %s41
    %p45 = pneg %p39
    %p46 = scmp.eq.s32.totalorder %s9, 3
    %p47 = por %p45, %p46
    %p48 = scmp.ne.s32.totalorder %s40, %s43
    %p49 = scmp.eq.s32.totalorder %s9, 0
    %p50 = por %p48, %p49
    %p51 = scmp.ne.s32.totalorder %s40, %s43
    %p52 = scmp.eq.s32.totalorder %s14, 3
    %p53 = por %p51, %p52
    %p54 = scmp.ne.s32.totalorder %s43, %s44
    %p55 = scmp.eq.s32.totalorder %s14, 0
    %p56 = por %p54, %p55
    %p57 = scmp.ne.s32.totalorder %s43, %s44
    %p58 = scmp.eq.s32.totalorder %s15, 3
    %p59 = por %p57, %p58
    %p61 = scmp.ne.s32.totalorder %s44, %s60
    %p62 = scmp.eq.s32.totalorder %s15, 0
    %p63 = por %p61, %p62
    %s64 = ssub.s32 %s18, %s27
    %s65 = ssub.s32 %s17, %s31
    %s66 = sor.u32 %s64, %s65
    %p67 = scmp.eq.s32.totalorder %s66, 0
    %s69 = sadd.s32 %s68, 1
    %s70 = scalar_select %p67, %s68, %s69
    %p73 = pneg %p67
    %p74 = scmp.eq.s32.totalorder %s9, 3
    %p75 = por %p73, %p74
    %p76 = scmp.ne.s32.totalorder %s68, %s71
    %p77 = scmp.eq.s32.totalorder %s9, 0
    %p78 = por %p76, %p77
    %p79 = scmp.ne.s32.totalorder %s68, %s71
    %p80 = scmp.eq.s32.totalorder %s14, 3
    %p81 = por %p79, %p80
    %p82 = scmp.ne.s32.totalorder %s71, %s72
    %p83 = scmp.eq.s32.totalorder %s14, 0
    %p84 = por %p82, %p83
    %p85 = scmp.ne.s32.totalorder %s71, %s72
    %p86 = scmp.eq.s32.totalorder %s15, 3
    %p87 = por %p85, %p86
    %p89 = scmp.ne.s32.totalorder %s72, %s88
    %p90 = scmp.eq.s32.totalorder %s15, 0
    %p91 = por %p89, %p90
    %s92 = ssub.s32 %s17, %s31
    %p93 = scmp.eq.s32.totalorder %s92, 0
    %s95 = sadd.s32 %s94, 1
    %s96 = scalar_select %p93, %s94, %s95
    %p99 = pneg %p93
    %p100 = scmp.eq.s32.totalorder %s9, 3
    %p101 = por %p99, %p100
    %p102 = scmp.ne.s32.totalorder %s94, %s97
    %p103 = scmp.eq.s32.totalorder %s9, 0
    %p104 = por %p102, %p103
    %p105 = scmp.ne.s32.totalorder %s94, %s97
    %p106 = scmp.eq.s32.totalorder %s14, 3
    %p107 = por %p105, %p106
    %p108 = scmp.ne.s32.totalorder %s97, %s98
    %p109 = scmp.eq.s32.totalorder %s14, 0
    %p110 = por %p108, %p109
    %p111 = scmp.ne.s32.totalorder %s97, %s98
    %p112 = scmp.eq.s32.totalorder %s15, 3
    %p113 = por %p111, %p112
    %p115 = scmp.ne.s32.totalorder %s98, %s114
    %p116 = scmp.eq.s32.totalorder %s15, 0
    %p117 = por %p115, %p116
    %s118 = ssub.s32 %s16, %s35
    %s119 = ssub.s32 %s17, %s31
    %s120 = sor.u32 %s118, %s119
    %p121 = scmp.eq.s32.totalorder %s120, 0
    %s123 = sadd.s32 %s122, 1
    %s124 = scalar_select %p121, %s122, %s123
    %p127 = pneg %p121
    %p128 = scmp.eq.s32.totalorder %s9, 3
    %p129 = por %p127, %p128
    %p130 = scmp.ne.s32.totalorder %s122, %s125
    %p131 = scmp.eq.s32.totalorder %s9, 0
    %p132 = por %p130, %p131
    %p133 = scmp.ne.s32.totalorder %s122, %s125
    %p134 = scmp.eq.s32.totalorder %s14, 3
    %p135 = por %p133, %p134
    %p136 = scmp.ne.s32.totalorder %s125, %s126
    %p137 = scmp.eq.s32.totalorder %s14, 0
    %p138 = por %p136, %p137
    %p139 = scmp.ne.s32.totalorder %s125, %s126
    %p140 = scmp.eq.s32.totalorder %s15, 3
    %p141 = por %p139, %p140
    %p143 = scmp.ne.s32.totalorder %s126, %s142
    %p144 = scmp.eq.s32.totalorder %s15, 0
    %p145 = por %p143, %p144
    %p146 = scmp.le.s32.totalorder 1, %s9
    %p147 = scmp.lt.s32.totalorder %s9, 5
    %p148 = pnand %p146, %p147
    %p149 = pneg %p148
    // Predicated region
    $region9: #{_lambda_.6} parent=5 // pred_check
      _
    $region10: #{_lambda_.6} parent=5 // pred_check_branch
      %151 = sbr.rel (%p148) target = $region12
    $region11: #{_lambda_.6} parent=5 // pred_region
      %s152 = ssub.s32 %s9, 1
      // Predicated region
      $region13: #{_lambda_.6} parent=11 // pred_check
        %p153 = pneg %p84
      $region14: #{_lambda_.6} parent=11 // pred_check_branch
        %155 = sbr.rel (%p153) target = $region16
      $region15: #{_lambda_.6} parent=11 // pred_region
        %s156 = smul.u32 80, %s21
        %p157 = scmp.lt.s32.totalorder %s156, 79
        %s158 = scalar_select %p157, %s156, 79
        %p159 = scmp.lt.s32.totalorder %s20, 0
        %s160 = scalar_select %p159, %s20, 0
        %s161 = sadd.s32 %s160, %s158
        %s162 = smul.addr %s161, 4
        %s163 = scalar_lea.vmem %s1, %s162
        %s164 = smul.u32 80, %s21
      $region16: #{_lambda_.6} parent=11 // pred_fallthru
        _
      // Predicated region
      $region17: #{_lambda_.6} parent=11 // pred_check
        %p165 = pneg %p110
      $region18: #{_lambda_.6} parent=11 // pred_check_branch
        %167 = sbr.rel (%p165) target = $region20
      $region19: #{_lambda_.6} parent=11 // pred_region
        %p168 = scmp.lt.s32.totalorder %s20, 0
        %s169 = scalar_select %p168, %s20, 0
        %s170 = scalar_lea.vmem %s2, %s169
      $region20: #{_lambda_.6} parent=11 // pred_fallthru
        _
    $region12: #{_lambda_.6} parent=5 // pred_fallthru
      _
    %p171 = scmp.lt.s32.totalorder %s9, 4
    // Predicated region
    $region21: #{_lambda_.6} parent=5 // pred_check
      %p172 = pneg %p171
    $region22: #{_lambda_.6} parent=5 // pred_check_branch
      %174 = sbr.rel (%p172) target = $region24
    $region23: #{_lambda_.6} parent=5 // pred_region
      // Predicated region
      $region25: #{_lambda_.6} parent=23 // pred_check
        %p175 = pneg %p50
      $region26: #{_lambda_.6} parent=23 // pred_check_branch
        %177 = sbr.rel (%p175) target = $region28
      $region27: #{_lambda_.6} parent=23 // pred_region
        %s178 = smul.u32 16, %s16
        %s179 = smul.u32 5, %s18
        %p180 = scmp.lt.s32.totalorder %s178, 63
        %s181 = scalar_select %p180, %s178, 63
        %p182 = scmp.lt.s32.totalorder %s179, 4
        %s183 = scalar_select %p182, %s179, 4
        %s184 = smul.addr %s181, 5
        %s185 = sadd.s32 %s183, %s184
        %s186 = smul.addr %s185, 4
        %s187 = scalar_lea.vmem %s0, %s186
        %s188 = smul.u32 16, %s16
        %s189 = smul.u32 5, %s18
      $region28: #{_lambda_.6} parent=23 // pred_fallthru
        _
    $region24: #{_lambda_.6} parent=5 // pred_fallthru
      _
    %p190 = scmp.le.s32.totalorder 1, %s9
    %p191 = scmp.lt.s32.totalorder %s9, 5
    %p192 = pnand %p190, %p191
    %p193 = pneg %p192
    // Predicated region
    $region29: #{_lambda_.6} parent=5 // pred_check
      _
    $region30: #{_lambda_.6} parent=5 // pred_check_branch
      %195 = sbr.rel (%p192) target = $region32
    $region31: #{_lambda_.6} parent=5 // pred_region
      %s196 = ssub.s32 %s9, 1
      %s197 = smul.u32 16, %s19
      %s198 = smul.u32 5, %s21
      %p199 = scmp.lt.s32.totalorder %s197, 63
      %s200 = scalar_select %p199, %s197, 63
      %p201 = scmp.lt.s32.totalorder %s198, 4
      %s202 = scalar_select %p201, %s198, 4
      %s203 = smul.addr %s200, 5
      %s204 = sadd.s32 %s202, %s203
      %s205 = smul.addr %s204, 4
      %s206 = scalar_lea.vmem %s0, %s205
      %p207 = pneg %p56
      %p208 = pneg %p53
      %s209 = smul.u32 80, %s21
      %p210 = scmp.lt.s32.totalorder %s209, 79
      %s211 = scalar_select %p210, %s209, 79
      %p212 = scmp.lt.s32.totalorder %s20, 0
      %s213 = scalar_select %p212, %s20, 0
      %s214 = sadd.s32 %s213, %s211
      %s215 = smul.addr %s214, 4
      %s216 = scalar_lea.vmem %s1, %s215
      %p217 = pneg %p84
      %p218 = pneg %p81
      %p219 = scmp.lt.s32.totalorder %s20, 0
      %s220 = scalar_select %p219, %s20, 0
      %s221 = scalar_lea.vmem %s2, %s220
      %p222 = pneg %p110
      %p223 = pneg %p107
      %p224 = pneg %p138
      %p225 = pneg %p135
      %s226 = smul.u32 16, %s19
      %p227 = scmp.lt.s32.totalorder %s226, 63
      %s228 = scalar_select %p227, %s226, 63
      %p229 = scmp.lt.s32.totalorder %s20, 0
      %s230 = scalar_select %p229, %s20, 0
      %s231 = sadd.s32 %s230, %s228
      %s232 = smul.addr %s231, 8
      %s233 = scalar_lea.vmem %s3, %s232
      %s234 = smul.u32 16, %s19
      %s235 = smul.u32 5, %s21
      %p236 = scmp.lt.s32.totalorder %s234, 63
      %s237 = scalar_select %p236, %s234, 63
      %p238 = scmp.lt.s32.totalorder %s235, 4
      %s239 = scalar_select %p238, %s235, 4
      %s240 = smul.addr %s237, 5
      %s241 = sadd.s32 %s239, %s240
      %s242 = smul.addr %s241, 4
      %s243 = scalar_lea.vmem %s0, %s242
      %s244 = smul.u32 16, %s19
      %s245 = smul.u32 5, %s21
      %s246 = smul.u32 80, %s21
      %p247 = scmp.lt.s32.totalorder %s246, 79
      %s248 = scalar_select %p247, %s246, 79
      %p249 = scmp.lt.s32.totalorder %s20, 0
      %s250 = scalar_select %p249, %s20, 0
      %s251 = sadd.s32 %s250, %s248
      %s252 = smul.addr %s251, 4
      %s253 = scalar_lea.vmem %s1, %s252
      %s254 = smul.u32 80, %s21
      %p255 = scmp.lt.s32.totalorder %s20, 0
      %s256 = scalar_select %p255, %s20, 0
      %s257 = scalar_lea.vmem %s2, %s256
      %s258 = smul.u32 16, %s19
      %p259 = scmp.lt.s32.totalorder %s258, 63
      %s260 = scalar_select %p259, %s258, 63
      %p261 = scmp.lt.s32.totalorder %s20, 0
      %s262 = scalar_select %p261, %s20, 0
      %s263 = sadd.s32 %s262, %s260
      %s264 = smul.addr %s263, 8
      %s265 = scalar_lea.vmem %s3, %s264
      %s266 = smul.u32 16, %s19
      %v267 = vld [vmem:[%s243] sm:$0xff]
      %v268 = vld [vmem:[%s243 + $0x8] sm:$0xff]
      %v269 = vld [vmem:[%s243 + $0x10] sm:$0xf]
      %v270 = vld [vmem:[%s243 + $0x14] sm:$0xff]
      %v271 = vld [vmem:[%s243 + $0x1c] sm:$0xff]
      %v272 = vld [vmem:[%s243 + $0x24] sm:$0xf]
      %v273 = vld [vmem:[%s243 + $0x28] sm:$0xff]
      %v274 = vld [vmem:[%s243 + $0x30] sm:$0xff]
      %v275 = vld [vmem:[%s243 + $0x38] sm:$0xf]
      %v276 = vld [vmem:[%s243 + $0x3c] sm:$0xff]
      %v277 = vld [vmem:[%s243 + $0x44] sm:$0xff]
      %v278 = vld [vmem:[%s243 + $0x4c] sm:$0xf]
      %v279 = vld [vmem:[%s243 + $0x50] sm:$0xff]
      %v280 = vld [vmem:[%s243 + $0x58] sm:$0xff]
      %v281 = vld [vmem:[%s243 + $0x60] sm:$0xf]
      %v282 = vld [vmem:[%s243 + $0x64] sm:$0xff]
      %v283 = vld [vmem:[%s243 + $0x6c] sm:$0xff]
      %v284 = vld [vmem:[%s243 + $0x74] sm:$0xf]
      %v285 = vld [vmem:[%s243 + $0x78] sm:$0xff]
      %v286 = vld [vmem:[%s243 + $0x80] sm:$0xff]
      %v287 = vld [vmem:[%s243 + $0x88] sm:$0xf]
      %v288 = vld [vmem:[%s243 + $0x8c] sm:$0xff]
      %v289 = vld [vmem:[%s243 + $0x94] sm:$0xff]
      %v290 = vld [vmem:[%s243 + $0x9c] sm:$0xf]
      %v291 = vld [vmem:[%s243 + $0xa0] sm:$0xff]
      %v292 = vld [vmem:[%s243 + $0xa8] sm:$0xff]
      %v293 = vld [vmem:[%s243 + $0xb0] sm:$0xf]
      %v294 = vld [vmem:[%s243 + $0xb4] sm:$0xff]
      %v295 = vld [vmem:[%s243 + $0xbc] sm:$0xff]
      %v296 = vld [vmem:[%s243 + $0xc4] sm:$0xf]
      %v297 = vld [vmem:[%s243 + $0xc8] sm:$0xff]
      %v298 = vld [vmem:[%s243 + $0xd0] sm:$0xff]
      %v299 = vld [vmem:[%s243 + $0xd8] sm:$0xf]
      %v300 = vld [vmem:[%s243 + $0xdc] sm:$0xff]
      %v301 = vld [vmem:[%s243 + $0xe4] sm:$0xff]
      %v302 = vld [vmem:[%s243 + $0xec] sm:$0xf]
      %v303 = vld [vmem:[%s243 + $0xf0] sm:$0xff]
      %v304 = vld [vmem:[%s243 + $0xf8] sm:$0xff]
      %v305 = vld [vmem:[%s243 + $0x100] sm:$0xf]
      %v306 = vld [vmem:[%s243 + $0x104] sm:$0xff]
      %v307 = vld [vmem:[%s243 + $0x10c] sm:$0xff]
      %v308 = vld [vmem:[%s243 + $0x114] sm:$0xf]
      %v309 = vld [vmem:[%s243 + $0x118] sm:$0xff]
      %v310 = vld [vmem:[%s243 + $0x120] sm:$0xff]
      %v311 = vld [vmem:[%s243 + $0x128] sm:$0xf]
      %v312 = vld [vmem:[%s243 + $0x12c] sm:$0xff]
      %v313 = vld [vmem:[%s243 + $0x134] sm:$0xff]
      %v314 = vld [vmem:[%s243 + $0x13c] sm:$0xf]
      %v315 = vld [vmem:[%s253] sm:$0xf]
      %v316 = vld [vmem:[%s253 + $0x4] sm:$0xf]
      %v317 = vld [vmem:[%s253 + $0x8] sm:$0xf]
      %v318 = vld [vmem:[%s253 + $0xc] sm:$0xf]
      %v319 = vld [vmem:[%s253 + $0x10] sm:$0xf]
      %v320 = vld [vmem:[%s253 + $0x14] sm:$0xf]
      %v321 = vld [vmem:[%s253 + $0x18] sm:$0xf]
      %v322 = vld [vmem:[%s253 + $0x1c] sm:$0xf]
      %v323 = vld [vmem:[%s253 + $0x20] sm:$0xf]
      %v324 = vld [vmem:[%s253 + $0x24] sm:$0xf]
      %v325 = vld [vmem:[%s253 + $0x28] sm:$0xf]
      %v326 = vld [vmem:[%s253 + $0x2c] sm:$0xf]
      %v327 = vld [vmem:[%s253 + $0x30] sm:$0xf]
      %v328 = vld [vmem:[%s253 + $0x34] sm:$0xf]
      %v329 = vld [vmem:[%s253 + $0x38] sm:$0xf]
      %v330 = vld [vmem:[%s253 + $0x3c] sm:$0xf]
      %v331 = vld [vmem:[%s253 + $0x40] sm:$0xf]
      %v332 = vld [vmem:[%s253 + $0x44] sm:$0xf]
      %v333 = vld [vmem:[%s253 + $0x48] sm:$0xf]
      %v334 = vld [vmem:[%s253 + $0x4c] sm:$0xf]
      %v335 = vld [vmem:[%s253 + $0x50] sm:$0xf]
      %v336 = vld [vmem:[%s253 + $0x54] sm:$0xf]
      %v337 = vld [vmem:[%s253 + $0x58] sm:$0xf]
      %v338 = vld [vmem:[%s253 + $0x5c] sm:$0xf]
      %v339 = vld [vmem:[%s253 + $0x60] sm:$0xf]
      %v340 = vld [vmem:[%s253 + $0x64] sm:$0xf]
      %v341 = vld [vmem:[%s253 + $0x68] sm:$0xf]
      %v342 = vld [vmem:[%s253 + $0x6c] sm:$0xf]
      %v343 = vld [vmem:[%s253 + $0x70] sm:$0xf]
      %v344 = vld [vmem:[%s253 + $0x74] sm:$0xf]
      %v345 = vld [vmem:[%s253 + $0x78] sm:$0xf]
      %v346 = vld [vmem:[%s253 + $0x7c] sm:$0xf]
      %v347 = vld [vmem:[%s253 + $0x80] sm:$0xf]
      %v348 = vld [vmem:[%s253 + $0x84] sm:$0xf]
      %v349 = vld [vmem:[%s253 + $0x88] sm:$0xf]
      %v350 = vld [vmem:[%s253 + $0x8c] sm:$0xf]
      %v351 = vld [vmem:[%s253 + $0x90] sm:$0xf]
      %v352 = vld [vmem:[%s253 + $0x94] sm:$0xf]
      %v353 = vld [vmem:[%s253 + $0x98] sm:$0xf]
      %v354 = vld [vmem:[%s253 + $0x9c] sm:$0xf]
      %v355 = vld [vmem:[%s253 + $0xa0] sm:$0xf]
      %v356 = vld [vmem:[%s253 + $0xa4] sm:$0xf]
      %v357 = vld [vmem:[%s253 + $0xa8] sm:$0xf]
      %v358 = vld [vmem:[%s253 + $0xac] sm:$0xf]
      %v359 = vld [vmem:[%s253 + $0xb0] sm:$0xf]
      %v360 = vld [vmem:[%s253 + $0xb4] sm:$0xf]
      %v361 = vld [vmem:[%s253 + $0xb8] sm:$0xf]
      %v362 = vld [vmem:[%s253 + $0xbc] sm:$0xf]
      %v363 = vld [vmem:[%s253 + $0xc0] sm:$0xf]
      %v364 = vld [vmem:[%s253 + $0xc4] sm:$0xf]
      %v365 = vld [vmem:[%s253 + $0xc8] sm:$0xf]
      %v366 = vld [vmem:[%s253 + $0xcc] sm:$0xf]
      %v367 = vld [vmem:[%s253 + $0xd0] sm:$0xf]
      %v368 = vld [vmem:[%s253 + $0xd4] sm:$0xf]
      %v369 = vld [vmem:[%s253 + $0xd8] sm:$0xf]
      %v370 = vld [vmem:[%s253 + $0xdc] sm:$0xf]
      %v371 = vld [vmem:[%s253 + $0xe0] sm:$0xf]
      %v372 = vld [vmem:[%s253 + $0xe4] sm:$0xf]
      %v373 = vld [vmem:[%s253 + $0xe8] sm:$0xf]
      %v374 = vld [vmem:[%s253 + $0xec] sm:$0xf]
      %v375 = vld [vmem:[%s253 + $0xf0] sm:$0xf]
      %v376 = vld [vmem:[%s253 + $0xf4] sm:$0xf]
      %v377 = vld [vmem:[%s253 + $0xf8] sm:$0xf]
      %v378 = vld [vmem:[%s253 + $0xfc] sm:$0xf]
      %v379 = vld [vmem:[%s253 + $0x100] sm:$0xf]
      %v380 = vld [vmem:[%s253 + $0x104] sm:$0xf]
      %v381 = vld [vmem:[%s253 + $0x108] sm:$0xf]
      %v382 = vld [vmem:[%s253 + $0x10c] sm:$0xf]
      %v383 = vld [vmem:[%s253 + $0x110] sm:$0xf]
      %v384 = vld [vmem:[%s253 + $0x114] sm:$0xf]
      %v385 = vld [vmem:[%s253 + $0x118] sm:$0xf]
      %v386 = vld [vmem:[%s253 + $0x11c] sm:$0xf]
      %v387 = vld [vmem:[%s253 + $0x120] sm:$0xf]
      %v388 = vld [vmem:[%s253 + $0x124] sm:$0xf]
      %v389 = vld [vmem:[%s253 + $0x128] sm:$0xf]
      %v390 = vld [vmem:[%s253 + $0x12c] sm:$0xf]
      %v391 = vld [vmem:[%s253 + $0x130] sm:$0xf]
      %v392 = vld [vmem:[%s253 + $0x134] sm:$0xf]
      %v393 = vld [vmem:[%s253 + $0x138] sm:$0xf]
      %v394 = vld [vmem:[%s253 + $0x13c] sm:$0xf]
      %v395 = vld [vmem:[%s257] sm:$0x1]
      %v397 = vperm.slane %v395, 0
      %v447 = vunpack.c.l.b16 %v267
      %v448 = vunpack.c.h.b16 %v267
      %v449 = vunpack.c.l.b16 %v268
      %v450 = vunpack.c.h.b16 %v268
      %v451 = vunpack.c.l.b16 %v269
      %v452 = vunpack.c.l.b16 %v270
      %v453 = vunpack.c.h.b16 %v270
      %v454 = vunpack.c.l.b16 %v271
      %v455 = vunpack.c.h.b16 %v271
      %v456 = vunpack.c.l.b16 %v272
      %v457 = vunpack.c.l.b16 %v273
      %v458 = vunpack.c.h.b16 %v273
      %v459 = vunpack.c.l.b16 %v274
      %v460 = vunpack.c.h.b16 %v274
      %v461 = vunpack.c.l.b16 %v275
      %v462 = vunpack.c.l.b16 %v276
      %v463 = vunpack.c.h.b16 %v276
      %v464 = vunpack.c.l.b16 %v277
      %v465 = vunpack.c.h.b16 %v277
      %v466 = vunpack.c.l.b16 %v278
      %v467 = vunpack.c.l.b16 %v279
      %v468 = vunpack.c.h.b16 %v279
      %v469 = vunpack.c.l.b16 %v280
      %v470 = vunpack.c.h.b16 %v280
      %v471 = vunpack.c.l.b16 %v281
      %v472 = vunpack.c.l.b16 %v282
      %v473 = vunpack.c.h.b16 %v282
      %v474 = vunpack.c.l.b16 %v283
      %v475 = vunpack.c.h.b16 %v283
      %v476 = vunpack.c.l.b16 %v284
      %v477 = vunpack.c.l.b16 %v285
      %v478 = vunpack.c.h.b16 %v285
      %v479 = vunpack.c.l.b16 %v286
      %v480 = vunpack.c.h.b16 %v286
      %v481 = vunpack.c.l.b16 %v287
      %v482 = vunpack.c.l.b16 %v288
      %v483 = vunpack.c.h.b16 %v288
      %v484 = vunpack.c.l.b16 %v289
      %v485 = vunpack.c.h.b16 %v289
      %v486 = vunpack.c.l.b16 %v290
      %v487 = vunpack.c.l.b16 %v291
      %v488 = vunpack.c.h.b16 %v291
      %v489 = vunpack.c.l.b16 %v292
      %v490 = vunpack.c.h.b16 %v292
      %v491 = vunpack.c.l.b16 %v293
      %v492 = vunpack.c.l.b16 %v294
      %v493 = vunpack.c.h.b16 %v294
      %v494 = vunpack.c.l.b16 %v295
      %v495 = vunpack.c.h.b16 %v295
      %v496 = vunpack.c.l.b16 %v296
      %v497 = vunpack.c.l.b16 %v297
      %v498 = vunpack.c.h.b16 %v297
      %v499 = vunpack.c.l.b16 %v298
      %v500 = vunpack.c.h.b16 %v298
      %v501 = vunpack.c.l.b16 %v299
      %v502 = vunpack.c.l.b16 %v300
      %v503 = vunpack.c.h.b16 %v300
      %v504 = vunpack.c.l.b16 %v301
      %v505 = vunpack.c.h.b16 %v301
      %v506 = vunpack.c.l.b16 %v302
      %v507 = vunpack.c.l.b16 %v303
      %v508 = vunpack.c.h.b16 %v303
      %v509 = vunpack.c.l.b16 %v304
      %v510 = vunpack.c.h.b16 %v304
      %v511 = vunpack.c.l.b16 %v305
      %v512 = vunpack.c.l.b16 %v306
      %v513 = vunpack.c.h.b16 %v306
      %v514 = vunpack.c.l.b16 %v307
      %v515 = vunpack.c.h.b16 %v307
      %v516 = vunpack.c.l.b16 %v308
      %v517 = vunpack.c.l.b16 %v309
      %v518 = vunpack.c.h.b16 %v309
      %v519 = vunpack.c.l.b16 %v310
      %v520 = vunpack.c.h.b16 %v310
      %v521 = vunpack.c.l.b16 %v311
      %v522 = vunpack.c.l.b16 %v312
      %v523 = vunpack.c.h.b16 %v312
      %v524 = vunpack.c.l.b16 %v313
      %v525 = vunpack.c.h.b16 %v313
      %v526 = vunpack.c.l.b16 %v314
      %v527 = vpack.c.b16 %v452, %v447
      %v528 = vpack.c.b16 %v453, %v448
      %v529 = vpack.c.b16 %v454, %v449
      %v530 = vpack.c.b16 %v455, %v450
      %v531 = vpack.c.b16 %v456, %v451
      %v532 = vpack.c.b16 %v462, %v457
      %v533 = vpack.c.b16 %v463, %v458
      %v534 = vpack.c.b16 %v464, %v459
      %v535 = vpack.c.b16 %v465, %v460
      %v536 = vpack.c.b16 %v466, %v461
      %v537 = vpack.c.b16 %v472, %v467
      %v538 = vpack.c.b16 %v473, %v468
      %v539 = vpack.c.b16 %v474, %v469
      %v540 = vpack.c.b16 %v475, %v470
      %v541 = vpack.c.b16 %v476, %v471
      %v542 = vpack.c.b16 %v482, %v477
      %v543 = vpack.c.b16 %v483, %v478
      %v544 = vpack.c.b16 %v484, %v479
      %v545 = vpack.c.b16 %v485, %v480
      %v546 = vpack.c.b16 %v486, %v481
      %v547 = vpack.c.b16 %v492, %v487
      %v548 = vpack.c.b16 %v493, %v488
      %v549 = vpack.c.b16 %v494, %v489
      %v550 = vpack.c.b16 %v495, %v490
      %v551 = vpack.c.b16 %v496, %v491
      %v552 = vpack.c.b16 %v502, %v497
      %v553 = vpack.c.b16 %v503, %v498
      %v554 = vpack.c.b16 %v504, %v499
      %v555 = vpack.c.b16 %v505, %v500
      %v556 = vpack.c.b16 %v506, %v501
      %v557 = vpack.c.b16 %v512, %v507
      %v558 = vpack.c.b16 %v513, %v508
      %v559 = vpack.c.b16 %v514, %v509
      %v560 = vpack.c.b16 %v515, %v510
      %v561 = vpack.c.b16 %v516, %v511
      %v562 = vpack.c.b16 %v522, %v517
      %v563 = vpack.c.b16 %v523, %v518
      %v564 = vpack.c.b16 %v524, %v519
      %v565 = vpack.c.b16 %v525, %v520
      %v566 = vpack.c.b16 %v526, %v521
      %v687 = vunpack.c.l.b16 %v315
      %v688 = vunpack.c.l.b16 %v316
      %v689 = vunpack.c.l.b16 %v317
      %v690 = vunpack.c.l.b16 %v318
      %v691 = vunpack.c.l.b16 %v319
      %v692 = vunpack.c.l.b16 %v320
      %v693 = vunpack.c.l.b16 %v321
      %v694 = vunpack.c.l.b16 %v322
      %v695 = vunpack.c.l.b16 %v323
      %v696 = vunpack.c.l.b16 %v324
      %v697 = vunpack.c.l.b16 %v325
      %v698 = vunpack.c.l.b16 %v326
      %v699 = vunpack.c.l.b16 %v327
      %v700 = vunpack.c.l.b16 %v328
      %v701 = vunpack.c.l.b16 %v329
      %v702 = vunpack.c.l.b16 %v330
      %v703 = vunpack.c.l.b16 %v331
      %v704 = vunpack.c.l.b16 %v332
      %v705 = vunpack.c.l.b16 %v333
      %v706 = vunpack.c.l.b16 %v334
      %v707 = vunpack.c.l.b16 %v335
      %v708 = vunpack.c.l.b16 %v336
      %v709 = vunpack.c.l.b16 %v337
      %v710 = vunpack.c.l.b16 %v338
      %v711 = vunpack.c.l.b16 %v339
      %v712 = vunpack.c.l.b16 %v340
      %v713 = vunpack.c.l.b16 %v341
      %v714 = vunpack.c.l.b16 %v342
      %v715 = vunpack.c.l.b16 %v343
      %v716 = vunpack.c.l.b16 %v344
      %v717 = vunpack.c.l.b16 %v345
      %v718 = vunpack.c.l.b16 %v346
      %v719 = vunpack.c.l.b16 %v347
      %v720 = vunpack.c.l.b16 %v348
      %v721 = vunpack.c.l.b16 %v349
      %v722 = vunpack.c.l.b16 %v350
      %v723 = vunpack.c.l.b16 %v351
      %v724 = vunpack.c.l.b16 %v352
      %v725 = vunpack.c.l.b16 %v353
      %v726 = vunpack.c.l.b16 %v354
      %v727 = vunpack.c.l.b16 %v355
      %v728 = vunpack.c.l.b16 %v356
      %v729 = vunpack.c.l.b16 %v357
      %v730 = vunpack.c.l.b16 %v358
      %v731 = vunpack.c.l.b16 %v359
      %v732 = vunpack.c.l.b16 %v360
      %v733 = vunpack.c.l.b16 %v361
      %v734 = vunpack.c.l.b16 %v362
      %v735 = vunpack.c.l.b16 %v363
      %v736 = vunpack.c.l.b16 %v364
      %v737 = vunpack.c.l.b16 %v365
      %v738 = vunpack.c.l.b16 %v366
      %v739 = vunpack.c.l.b16 %v367
      %v740 = vunpack.c.l.b16 %v368
      %v741 = vunpack.c.l.b16 %v369
      %v742 = vunpack.c.l.b16 %v370
      %v743 = vunpack.c.l.b16 %v371
      %v744 = vunpack.c.l.b16 %v372
      %v745 = vunpack.c.l.b16 %v373
      %v746 = vunpack.c.l.b16 %v374
      %v747 = vunpack.c.l.b16 %v375
      %v748 = vunpack.c.l.b16 %v376
      %v749 = vunpack.c.l.b16 %v377
      %v750 = vunpack.c.l.b16 %v378
      %v751 = vunpack.c.l.b16 %v379
      %v752 = vunpack.c.l.b16 %v380
      %v753 = vunpack.c.l.b16 %v381
      %v754 = vunpack.c.l.b16 %v382
      %v755 = vunpack.c.l.b16 %v383
      %v756 = vunpack.c.l.b16 %v384
      %v757 = vunpack.c.l.b16 %v385
      %v758 = vunpack.c.l.b16 %v386
      %v759 = vunpack.c.l.b16 %v387
      %v760 = vunpack.c.l.b16 %v388
      %v761 = vunpack.c.l.b16 %v389
      %v762 = vunpack.c.l.b16 %v390
      %v763 = vunpack.c.l.b16 %v391
      %v764 = vunpack.c.l.b16 %v392
      %v765 = vunpack.c.l.b16 %v393
      %v766 = vunpack.c.l.b16 %v394
      %v767 = vpack.c.b16 %v688, %v687
      %v768 = vpack.c.b16 %v690, %v689
      %v769 = vpack.c.b16 %v692, %v691
      %v770 = vpack.c.b16 %v694, %v693
      %v771 = vpack.c.b16 %v696, %v695
      %v772 = vpack.c.b16 %v698, %v697
      %v773 = vpack.c.b16 %v700, %v699
      %v774 = vpack.c.b16 %v702, %v701
      %v775 = vpack.c.b16 %v704, %v703
      %v776 = vpack.c.b16 %v706, %v705
      %v777 = vpack.c.b16 %v708, %v707
      %v778 = vpack.c.b16 %v710, %v709
      %v779 = vpack.c.b16 %v712, %v711
      %v780 = vpack.c.b16 %v714, %v713
      %v781 = vpack.c.b16 %v716, %v715
      %v782 = vpack.c.b16 %v718, %v717
      %v783 = vpack.c.b16 %v720, %v719
      %v784 = vpack.c.b16 %v722, %v721
      %v785 = vpack.c.b16 %v724, %v723
      %v786 = vpack.c.b16 %v726, %v725
      %v787 = vpack.c.b16 %v728, %v727
      %v788 = vpack.c.b16 %v730, %v729
      %v789 = vpack.c.b16 %v732, %v731
      %v790 = vpack.c.b16 %v734, %v733
      %v791 = vpack.c.b16 %v736, %v735
      %v792 = vpack.c.b16 %v738, %v737
      %v793 = vpack.c.b16 %v740, %v739
      %v794 = vpack.c.b16 %v742, %v741
      %v795 = vpack.c.b16 %v744, %v743
      %v796 = vpack.c.b16 %v746, %v745
      %v797 = vpack.c.b16 %v748, %v747
      %v798 = vpack.c.b16 %v750, %v749
      %v799 = vpack.c.b16 %v752, %v751
      %v800 = vpack.c.b16 %v754, %v753
      %v801 = vpack.c.b16 %v756, %v755
      %v802 = vpack.c.b16 %v758, %v757
      %v803 = vpack.c.b16 %v760, %v759
      %v804 = vpack.c.b16 %v762, %v761
      %v805 = vpack.c.b16 %v764, %v763
      %v806 = vpack.c.b16 %v766, %v765
      %847 = vmatpush.bf16.msra.mxu0 %v774
      %848 = vmatpush.bf16.msra.mxu0 %v773
      %849 = vmatpush.bf16.msra.mxu0 %v772
      %850 = vmatpush.bf16.msra.mxu0 %v771
      %851 = vmatpush.bf16.msra.mxu0 %v770
      %852 = vmatpush.bf16.msra.mxu0 %v769
      %853 = vmatpush.bf16.msra.mxu0 %v768
      %854 = vmatpush.bf16.msra.mxu0 %v767
      %855 = vmatmul.bf16.gmra.mxu0 %v527
      %v856 = vpop.f32.mrf.mxu0
      %v857 = vadd.f32 %v397, %v856
      %v858 = vpop.f32.mrf.mxu0
      %v859 = vadd.f32 %v397, %v858
      %860 = vmatmul.bf16.gmra.mxu0 %v532
      %v861 = vpop.f32.mrf.mxu0
      %v862 = vadd.f32 %v397, %v861
      %v863 = vpop.f32.mrf.mxu0
      %v864 = vadd.f32 %v397, %v863
      %865 = vmatmul.bf16.gmra.mxu0 %v537
      %v866 = vpop.f32.mrf.mxu0
      %v867 = vadd.f32 %v397, %v866
      %v868 = vpop.f32.mrf.mxu0
      %v869 = vadd.f32 %v397, %v868
      %870 = vmatmul.bf16.gmra.mxu0 %v542
      %v871 = vpop.f32.mrf.mxu0
      %v872 = vadd.f32 %v397, %v871
      %v873 = vpop.f32.mrf.mxu0
      %v874 = vadd.f32 %v397, %v873
      %875 = vmatmul.bf16.gmra.mxu0 %v547
      %v876 = vpop.f32.mrf.mxu0
      %v877 = vadd.f32 %v397, %v876
      %v878 = vpop.f32.mrf.mxu0
      %v879 = vadd.f32 %v397, %v878
      %880 = vmatmul.bf16.gmra.mxu0 %v552
      %v881 = vpop.f32.mrf.mxu0
      %v882 = vadd.f32 %v397, %v881
      %v883 = vpop.f32.mrf.mxu0
      %v884 = vadd.f32 %v397, %v883
      %885 = vmatmul.bf16.gmra.mxu0 %v557
      %v886 = vpop.f32.mrf.mxu0
      %v887 = vadd.f32 %v397, %v886
      %v888 = vpop.f32.mrf.mxu0
      %v889 = vadd.f32 %v397, %v888
      %890 = vmatmul.bf16.gmra.mxu0 %v562
      %v891 = vpop.f32.mrf.mxu0
      %v892 = vadd.f32 %v397, %v891
      %v893 = vpop.f32.mrf.mxu0
      %v894 = vadd.f32 %v397, %v893
      %895 = vdwg.mxu0
      %896 = vmatpush.bf16.msra.mxu0 %v782
      %897 = vmatpush.bf16.msra.mxu0 %v781
      %898 = vmatpush.bf16.msra.mxu0 %v780
      %899 = vmatpush.bf16.msra.mxu0 %v779
      %900 = vmatpush.bf16.msra.mxu0 %v778
      %901 = vmatpush.bf16.msra.mxu0 %v777
      %902 = vmatpush.bf16.msra.mxu0 %v776
      %903 = vmatpush.bf16.msra.mxu0 %v775
      %904 = vmatmul.bf16.gmra.mxu0 %v528
      %v905 = vpop.f32.mrf.mxu0
      %v906 = vadd.f32 %v857, %v905
      %v907 = vpop.f32.mrf.mxu0
      %v908 = vadd.f32 %v859, %v907
      %909 = vmatmul.bf16.gmra.mxu0 %v533
      %v910 = vpop.f32.mrf.mxu0
      %v911 = vadd.f32 %v862, %v910
      %v912 = vpop.f32.mrf.mxu0
      %v913 = vadd.f32 %v864, %v912
      %914 = vmatmul.bf16.gmra.mxu0 %v538
      %v915 = vpop.f32.mrf.mxu0
      %v916 = vadd.f32 %v867, %v915
      %v917 = vpop.f32.mrf.mxu0
      %v918 = vadd.f32 %v869, %v917
      %919 = vmatmul.bf16.gmra.mxu0 %v543
      %v920 = vpop.f32.mrf.mxu0
      %v921 = vadd.f32 %v872, %v920
      %v922 = vpop.f32.mrf.mxu0
      %v923 = vadd.f32 %v874, %v922
      %924 = vmatmul.bf16.gmra.mxu0 %v548
      %v925 = vpop.f32.mrf.mxu0
      %v926 = vadd.f32 %v877, %v925
      %v927 = vpop.f32.mrf.mxu0
      %v928 = vadd.f32 %v879, %v927
      %929 = vmatmul.bf16.gmra.mxu0 %v553
      %v930 = vpop.f32.mrf.mxu0
      %v931 = vadd.f32 %v882, %v930
      %v932 = vpop.f32.mrf.mxu0
      %v933 = vadd.f32 %v884, %v932
      %934 = vmatmul.bf16.gmra.mxu0 %v558
      %v935 = vpop.f32.mrf.mxu0
      %v936 = vadd.f32 %v887, %v935
      %v937 = vpop.f32.mrf.mxu0
      %v938 = vadd.f32 %v889, %v937
      %939 = vmatmul.bf16.gmra.mxu0 %v563
      %v940 = vpop.f32.mrf.mxu0
      %v941 = vadd.f32 %v892, %v940
      %v942 = vpop.f32.mrf.mxu0
      %v943 = vadd.f32 %v894, %v942
      %944 = vdwg.mxu0
      %945 = vmatpush.bf16.msra.mxu0 %v790
      %946 = vmatpush.bf16.msra.mxu0 %v789
      %947 = vmatpush.bf16.msra.mxu0 %v788
      %948 = vmatpush.bf16.msra.mxu0 %v787
      %949 = vmatpush.bf16.msra.mxu0 %v786
      %950 = vmatpush.bf16.msra.mxu0 %v785
      %951 = vmatpush.bf16.msra.mxu0 %v784
      %952 = vmatpush.bf16.msra.mxu0 %v783
      %953 = vmatmul.bf16.gmra.mxu0 %v529
      %v954 = vpop.f32.mrf.mxu0
      %v955 = vadd.f32 %v906, %v954
      %v956 = vpop.f32.mrf.mxu0
      %v957 = vadd.f32 %v908, %v956
      %958 = vmatmul.bf16.gmra.mxu0 %v534
      %v959 = vpop.f32.mrf.mxu0
      %v960 = vadd.f32 %v911, %v959
      %v961 = vpop.f32.mrf.mxu0
      %v962 = vadd.f32 %v913, %v961
      %963 = vmatmul.bf16.gmra.mxu0 %v539
      %v964 = vpop.f32.mrf.mxu0
      %v965 = vadd.f32 %v916, %v964
      %v966 = vpop.f32.mrf.mxu0
      %v967 = vadd.f32 %v918, %v966
      %968 = vmatmul.bf16.gmra.mxu0 %v544
      %v969 = vpop.f32.mrf.mxu0
      %v970 = vadd.f32 %v921, %v969
      %v971 = vpop.f32.mrf.mxu0
      %v972 = vadd.f32 %v923, %v971
      %973 = vmatmul.bf16.gmra.mxu0 %v549
      %v974 = vpop.f32.mrf.mxu0
      %v975 = vadd.f32 %v926, %v974
      %v976 = vpop.f32.mrf.mxu0
      %v977 = vadd.f32 %v928, %v976
      %978 = vmatmul.bf16.gmra.mxu0 %v554
      %v979 = vpop.f32.mrf.mxu0
      %v980 = vadd.f32 %v931, %v979
      %v981 = vpop.f32.mrf.mxu0
      %v982 = vadd.f32 %v933, %v981
      %983 = vmatmul.bf16.gmra.mxu0 %v559
      %v984 = vpop.f32.mrf.mxu0
      %v985 = vadd.f32 %v936, %v984
      %v986 = vpop.f32.mrf.mxu0
      %v987 = vadd.f32 %v938, %v986
      %988 = vmatmul.bf16.gmra.mxu0 %v564
      %v989 = vpop.f32.mrf.mxu0
      %v990 = vadd.f32 %v941, %v989
      %v991 = vpop.f32.mrf.mxu0
      %v992 = vadd.f32 %v943, %v991
      %993 = vdwg.mxu0
      %994 = vmatpush.bf16.msra.mxu0 %v798
      %995 = vmatpush.bf16.msra.mxu0 %v797
      %996 = vmatpush.bf16.msra.mxu0 %v796
      %997 = vmatpush.bf16.msra.mxu0 %v795
      %998 = vmatpush.bf16.msra.mxu0 %v794
      %999 = vmatpush.bf16.msra.mxu0 %v793
      %1000 = vmatpush.bf16.msra.mxu0 %v792
      %1001 = vmatpush.bf16.msra.mxu0 %v791
      %1002 = vmatmul.bf16.gmra.mxu0 %v530
      %v1003 = vpop.f32.mrf.mxu0
      %v1004 = vadd.f32 %v955, %v1003
      %v1005 = vpop.f32.mrf.mxu0
      %v1006 = vadd.f32 %v957, %v1005
      %1007 = vmatmul.bf16.gmra.mxu0 %v535
      %v1008 = vpop.f32.mrf.mxu0
      %v1009 = vadd.f32 %v960, %v1008
      %v1010 = vpop.f32.mrf.mxu0
      %v1011 = vadd.f32 %v962, %v1010
      %1012 = vmatmul.bf16.gmra.mxu0 %v540
      %v1013 = vpop.f32.mrf.mxu0
      %v1014 = vadd.f32 %v965, %v1013
      %v1015 = vpop.f32.mrf.mxu0
      %v1016 = vadd.f32 %v967, %v1015
      %1017 = vmatmul.bf16.gmra.mxu0 %v545
      %v1018 = vpop.f32.mrf.mxu0
      %v1019 = vadd.f32 %v970, %v1018
      %v1020 = vpop.f32.mrf.mxu0
      %v1021 = vadd.f32 %v972, %v1020
      %1022 = vmatmul.bf16.gmra.mxu0 %v550
      %v1023 = vpop.f32.mrf.mxu0
      %v1024 = vadd.f32 %v975, %v1023
      %v1025 = vpop.f32.mrf.mxu0
      %v1026 = vadd.f32 %v977, %v1025
      %1027 = vmatmul.bf16.gmra.mxu0 %v555
      %v1028 = vpop.f32.mrf.mxu0
      %v1029 = vadd.f32 %v980, %v1028
      %v1030 = vpop.f32.mrf.mxu0
      %v1031 = vadd.f32 %v982, %v1030
      %1032 = vmatmul.bf16.gmra.mxu0 %v560
      %v1033 = vpop.f32.mrf.mxu0
      %v1034 = vadd.f32 %v985, %v1033
      %v1035 = vpop.f32.mrf.mxu0
      %v1036 = vadd.f32 %v987, %v1035
      %1037 = vmatmul.bf16.gmra.mxu0 %v565
      %v1038 = vpop.f32.mrf.mxu0
      %v1039 = vadd.f32 %v990, %v1038
      %v1040 = vpop.f32.mrf.mxu0
      %v1041 = vadd.f32 %v992, %v1040
      %1042 = vdwg.mxu0
      %1043 = vmatpush.bf16.msra.mxu0 %v806
      %1044 = vmatpush.bf16.msra.mxu0 %v805
      %1045 = vmatpush.bf16.msra.mxu0 %v804
      %1046 = vmatpush.bf16.msra.mxu0 %v803
      %1047 = vmatpush.bf16.msra.mxu0 %v802
      %1048 = vmatpush.bf16.msra.mxu0 %v801
      %1049 = vmatpush.bf16.msra.mxu0 %v800
      %1050 = vmatpush.bf16.msra.mxu0 %v799
      %1051 = vmatmul.bf16.gmra.mxu0 %v531
      %v1052 = vpop.f32.mrf.mxu0
      %v1053 = vadd.f32 %v1004, %v1052
      %v1054 = vpop.f32.mrf.mxu0
      %v1055 = vadd.f32 %v1006, %v1054
      %1056 = vmatmul.bf16.gmra.mxu0 %v536
      %v1057 = vpop.f32.mrf.mxu0
      %v1058 = vadd.f32 %v1009, %v1057
      %v1059 = vpop.f32.mrf.mxu0
      %v1060 = vadd.f32 %v1011, %v1059
      %1061 = vmatmul.bf16.gmra.mxu0 %v541
      %v1062 = vpop.f32.mrf.mxu0
      %v1063 = vadd.f32 %v1014, %v1062
      %v1064 = vpop.f32.mrf.mxu0
      %v1065 = vadd.f32 %v1016, %v1064
      %1066 = vmatmul.bf16.gmra.mxu0 %v546
      %v1067 = vpop.f32.mrf.mxu0
      %v1068 = vadd.f32 %v1019, %v1067
      %v1069 = vpop.f32.mrf.mxu0
      %v1070 = vadd.f32 %v1021, %v1069
      %1071 = vmatmul.bf16.gmra.mxu0 %v551
      %v1072 = vpop.f32.mrf.mxu0
      %v1073 = vadd.f32 %v1024, %v1072
      %v1074 = vpop.f32.mrf.mxu0
      %v1075 = vadd.f32 %v1026, %v1074
      %1076 = vmatmul.bf16.gmra.mxu0 %v556
      %v1077 = vpop.f32.mrf.mxu0
      %v1078 = vadd.f32 %v1029, %v1077
      %v1079 = vpop.f32.mrf.mxu0
      %v1080 = vadd.f32 %v1031, %v1079
      %1081 = vmatmul.bf16.gmra.mxu0 %v561
      %v1082 = vpop.f32.mrf.mxu0
      %v1083 = vadd.f32 %v1034, %v1082
      %v1084 = vpop.f32.mrf.mxu0
      %v1085 = vadd.f32 %v1036, %v1084
      %1086 = vmatmul.bf16.gmra.mxu0 %v566
      %v1087 = vpop.f32.mrf.mxu0
      %v1088 = vadd.f32 %v1039, %v1087
      %v1089 = vpop.f32.mrf.mxu0
      %v1090 = vadd.f32 %v1041, %v1089
      %1091 = vdwg.mxu0
      %v1092 = vmax.f32 %v1053, 0.0
      %v1093 = vmax.f32 %v1055, 0.0
      %v1094 = vmax.f32 %v1058, 0.0
      %v1095 = vmax.f32 %v1060, 0.0
      %v1096 = vmax.f32 %v1063, 0.0
      %v1097 = vmax.f32 %v1065, 0.0
      %v1098 = vmax.f32 %v1068, 0.0
      %v1099 = vmax.f32 %v1070, 0.0
      %v1100 = vmax.f32 %v1073, 0.0
      %v1101 = vmax.f32 %v1075, 0.0
      %v1102 = vmax.f32 %v1078, 0.0
      %v1103 = vmax.f32 %v1080, 0.0
      %v1104 = vmax.f32 %v1083, 0.0
      %v1105 = vmax.f32 %v1085, 0.0
      %v1106 = vmax.f32 %v1088, 0.0
      %v1107 = vmax.f32 %v1090, 0.0
      %1108 = vst [vmem:[%s265] sm:$0xff] %v1092
      %1109 = vst [vmem:[%s265 + $0x8] sm:$0xff] %v1093
      %1110 = vst [vmem:[%s265 + $0x10] sm:$0xff] %v1094
      %1111 = vst [vmem:[%s265 + $0x18] sm:$0xff] %v1095
      %1112 = vst [vmem:[%s265 + $0x20] sm:$0xff] %v1096
      %1113 = vst [vmem:[%s265 + $0x28] sm:$0xff] %v1097
      %1114 = vst [vmem:[%s265 + $0x30] sm:$0xff] %v1098
      %1115 = vst [vmem:[%s265 + $0x38] sm:$0xff] %v1099
      %1116 = vst [vmem:[%s265 + $0x40] sm:$0xff] %v1100
      %1117 = vst [vmem:[%s265 + $0x48] sm:$0xff] %v1101
      %1118 = vst [vmem:[%s265 + $0x50] sm:$0xff] %v1102
      %1119 = vst [vmem:[%s265 + $0x58] sm:$0xff] %v1103
      %1120 = vst [vmem:[%s265 + $0x60] sm:$0xff] %v1104
      %1121 = vst [vmem:[%s265 + $0x68] sm:$0xff] %v1105
      %1122 = vst [vmem:[%s265 + $0x70] sm:$0xff] %v1106
      %1123 = vst [vmem:[%s265 + $0x78] sm:$0xff] %v1107
      %s1124 = smul.u32 16, %s19
      %p1125 = scmp.lt.s32.totalorder %s1124, 63
      %s1126 = scalar_select %p1125, %s1124, 63
      %p1127 = scmp.lt.s32.totalorder %s20, 0
      %s1128 = scalar_select %p1127, %s20, 0
      %s1129 = sadd.s32 %s1128, %s1126
      %s1130 = smul.addr %s1129, 8
      %s1131 = scalar_lea.vmem %s3, %s1130
      // Predicated region
      $region33: #{_lambda_.6} parent=31 // pred_check
        %p1132 = pneg %p135
      $region34: #{_lambda_.6} parent=31 // pred_check_branch
        %1134 = sbr.rel (%p1132) target = $region36
      $region35: #{_lambda_.6} parent=31 // pred_region
        %s1135 = smul.u32 16, %s19
      $region36: #{_lambda_.6} parent=31 // pred_fallthru
        _
    $region32: #{_lambda_.6} parent=5 // pred_fallthru
      _
    %p1136 = scmp.le.s32.totalorder 2, %s9
    // Predicated region
    $region37: #{_lambda_.6} parent=5 // pred_check
      %p1137 = pneg %p1136
    $region38: #{_lambda_.6} parent=5 // pred_check_branch
      %1139 = sbr.rel (%p1137) target = $region40
    $region39: #{_lambda_.6} parent=5 // pred_region
      %s1140 = ssub.s32 %s9, 2
      // Predicated region
      $region41: #{_lambda_.6} parent=39 // pred_check
        %p1141 = pneg %p141
      $region42: #{_lambda_.6} parent=39 // pred_check_branch
        %1143 = sbr.rel (%p1141) target = $region44
      $region43: #{_lambda_.6} parent=39 // pred_region
        %s1144 = smul.u32 16, %s22
        %p1145 = scmp.lt.s32.totalorder %s1144, 63
        %s1146 = scalar_select %p1145, %s1144, 63
        %p1147 = scmp.lt.s32.totalorder %s23, 0
        %s1148 = scalar_select %p1147, %s23, 0
        %s1149 = sadd.s32 %s1148, %s1146
        %s1150 = smul.addr %s1149, 8
        %s1151 = scalar_lea.vmem %s3, %s1150
      $region44: #{_lambda_.6} parent=39 // pred_fallthru
        _
    $region40: #{_lambda_.6} parent=5 // pred_fallthru
      _
  $region6: #{_lambda_.6} parent=0 // loop_footer
    %s13 = sadd.s32 1, %s9
  $region7: #{_lambda_.6} parent=0 // loop_footer_branch
    %8 = sbr.rel target = $region3
  $region8: #{_lambda_.6} parent=0 // loop_exit
    _

// kernel: _lambda_.8
$region0: #{_lambda_.8}
  #allocation0 [shape = 'u32[]', space=smem, size = 0x4, offset = 0x4, fixed_abs, tag = 'smem constant byte address 0x4 - core index']
  #allocation1 [shape = 'u32[72,128]{1,0:T(1,128)}', space=vmem, size = 0x9000, scoped, tag = 'internal scratch']
  %s0 = inlined_call_operand.vmem [shape: bf16[512,384], index: 0, kind: input, shape index: {}]
  %s1 = inlined_call_operand.vmem [shape: bf16[384,128], index: 1, kind: input, shape index: {}]
  %s2 = inlined_call_operand.vmem [shape: f32[1,128], index: 2, kind: input, shape index: {}]
  %s3 = inlined_call_operand.vmem [shape: f32[512,128], index: 3, kind: output, shape index: {}]
  %s4 = sld [smem:[#allocation0]]
  $region45: #{_lambda_.8} parent=0
    _
  %s6 = ssub.s32 1, %s4
  %s7 = scalar_select 0, %s6, %s4
  loop: start=0, step=1, limit=6
  $region2: #{_lambda_.8} parent=0 // loop_pre_header
    _
  $region3: #{_lambda_.8} parent=0 // loop_header
    %s9 = sphi 0, %s13
    %p10 = scmp.ge.s32.totalorder %s9, 6
    %s16 = sphi 0, %s35
    %s17 = sphi 0, %s31
    %s18 = sphi 0, %s27
    %s19 = sphi 0, %s16
    %s20 = sphi 0, %s17
    %s21 = sphi 0, %s18
    %s22 = sphi 0, %s19
    %s23 = sphi 0, %s20
    %s24 = sphi 0, %s21
    %s40 = sphi 0, %s42
    %s43 = sphi 0, %s40
    %s44 = sphi 0, %s43
    %s60 = sphi 0, %s44
    %s68 = sphi 0, %s70
    %s71 = sphi 0, %s68
    %s72 = sphi 0, %s71
    %s88 = sphi 0, %s72
    %s94 = sphi 0, %s96
    %s97 = sphi 0, %s94
    %s98 = sphi 0, %s97
    %s114 = sphi 0, %s98
    %s122 = sphi 0, %s124
    %s125 = sphi 0, %s122
    %s126 = sphi 0, %s125
    %s142 = sphi 0, %s126
  $region4: #{_lambda_.8} parent=0 // loop_header_branch
    %12 = sbr.rel (%p10) target = $region8
  $region5: #{_lambda_.8} parent=0 // loop_body
    %s14 = ssub.s32 %s9, 1
    %s15 = ssub.s32 %s9, 2
    %s25 = sadd.s32 1, %s18
    %p26 = scmp.ge.s32.totalorder %s25, 1
    %s27 = scalar_select %p26, 0, %s25
    %s28 = sadd.s32 1, %s17
    %s29 = scalar_select %p26, %s28, %s17
    %p30 = scmp.ge.s32.totalorder %s29, 1
    %s31 = scalar_select %p30, 0, %s29
    %s32 = sadd.s32 1, %s16
    %s33 = scalar_select %p30, %s32, %s16
    %p34 = scmp.ge.s32.totalorder %s33, 4
    %s35 = scalar_select %p34, 0, %s33
    %s36 = ssub.s32 %s16, %s35
    %s37 = ssub.s32 %s18, %s27
    %s38 = sor.u32 %s36, %s37
    %p39 = scmp.eq.s32.totalorder %s38, 0
    %s41 = sadd.s32 %s40, 1
    %s42 = scalar_select %p39, %s40, %s41
    %p45 = pneg %p39
    %p46 = scmp.eq.s32.totalorder %s9, 3
    %p47 = por %p45, %p46
    %p48 = scmp.ne.s32.totalorder %s40, %s43
    %p49 = scmp.eq.s32.totalorder %s9, 0
    %p50 = por %p48, %p49
    %p51 = scmp.ne.s32.totalorder %s40, %s43
    %p52 = scmp.eq.s32.totalorder %s14, 3
    %p53 = por %p51, %p52
    %p54 = scmp.ne.s32.totalorder %s43, %s44
    %p55 = scmp.eq.s32.totalorder %s14, 0
    %p56 = por %p54, %p55
    %p57 = scmp.ne.s32.totalorder %s43, %s44
    %p58 = scmp.eq.s32.totalorder %s15, 3
    %p59 = por %p57, %p58
    %p61 = scmp.ne.s32.totalorder %s44, %s60
    %p62 = scmp.eq.s32.totalorder %s15, 0
    %p63 = por %p61, %p62
    %s64 = ssub.s32 %s18, %s27
    %s65 = ssub.s32 %s17, %s31
    %s66 = sor.u32 %s64, %s65
    %p67 = scmp.eq.s32.totalorder %s66, 0
    %s69 = sadd.s32 %s68, 1
    %s70 = scalar_select %p67, %s68, %s69
    %p73 = pneg %p67
    %p74 = scmp.eq.s32.totalorder %s9, 3
    %p75 = por %p73, %p74
    %p76 = scmp.ne.s32.totalorder %s68, %s71
    %p77 = scmp.eq.s32.totalorder %s9, 0
    %p78 = por %p76, %p77
    %p79 = scmp.ne.s32.totalorder %s68, %s71
    %p80 = scmp.eq.s32.totalorder %s14, 3
    %p81 = por %p79, %p80
    %p82 = scmp.ne.s32.totalorder %s71, %s72
    %p83 = scmp.eq.s32.totalorder %s14, 0
    %p84 = por %p82, %p83
    %p85 = scmp.ne.s32.totalorder %s71, %s72
    %p86 = scmp.eq.s32.totalorder %s15, 3
    %p87 = por %p85, %p86
    %p89 = scmp.ne.s32.totalorder %s72, %s88
    %p90 = scmp.eq.s32.totalorder %s15, 0
    %p91 = por %p89, %p90
    %s92 = ssub.s32 %s17, %s31
    %p93 = scmp.eq.s32.totalorder %s92, 0
    %s95 = sadd.s32 %s94, 1
    %s96 = scalar_select %p93, %s94, %s95
    %p99 = pneg %p93
    %p100 = scmp.eq.s32.totalorder %s9, 3
    %p101 = por %p99, %p100
    %p102 = scmp.ne.s32.totalorder %s94, %s97
    %p103 = scmp.eq.s32.totalorder %s9, 0
    %p104 = por %p102, %p103
    %p105 = scmp.ne.s32.totalorder %s94, %s97
    %p106 = scmp.eq.s32.totalorder %s14, 3
    %p107 = por %p105, %p106
    %p108 = scmp.ne.s32.totalorder %s97, %s98
    %p109 = scmp.eq.s32.totalorder %s14, 0
    %p110 = por %p108, %p109
    %p111 = scmp.ne.s32.totalorder %s97, %s98
    %p112 = scmp.eq.s32.totalorder %s15, 3
    %p113 = por %p111, %p112
    %p115 = scmp.ne.s32.totalorder %s98, %s114
    %p116 = scmp.eq.s32.totalorder %s15, 0
    %p117 = por %p115, %p116
    %s118 = ssub.s32 %s16, %s35
    %s119 = ssub.s32 %s17, %s31
    %s120 = sor.u32 %s118, %s119
    %p121 = scmp.eq.s32.totalorder %s120, 0
    %s123 = sadd.s32 %s122, 1
    %s124 = scalar_select %p121, %s122, %s123
    %p127 = pneg %p121
    %p128 = scmp.eq.s32.totalorder %s9, 3
    %p129 = por %p127, %p128
    %p130 = scmp.ne.s32.totalorder %s122, %s125
    %p131 = scmp.eq.s32.totalorder %s9, 0
    %p132 = por %p130, %p131
    %p133 = scmp.ne.s32.totalorder %s122, %s125
    %p134 = scmp.eq.s32.totalorder %s14, 3
    %p135 = por %p133, %p134
    %p136 = scmp.ne.s32.totalorder %s125, %s126
    %p137 = scmp.eq.s32.totalorder %s14, 0
    %p138 = por %p136, %p137
    %p139 = scmp.ne.s32.totalorder %s125, %s126
    %p140 = scmp.eq.s32.totalorder %s15, 3
    %p141 = por %p139, %p140
    %p143 = scmp.ne.s32.totalorder %s126, %s142
    %p144 = scmp.eq.s32.totalorder %s15, 0
    %p145 = por %p143, %p144
    %p146 = scmp.le.s32.totalorder 1, %s9
    %p147 = scmp.lt.s32.totalorder %s9, 5
    %p148 = pnand %p146, %p147
    %p149 = pneg %p148
    // Predicated region
    $region9: #{_lambda_.8} parent=5 // pred_check
      _
    $region10: #{_lambda_.8} parent=5 // pred_check_branch
      %151 = sbr.rel (%p148) target = $region12
    $region11: #{_lambda_.8} parent=5 // pred_region
      %s152 = ssub.s32 %s9, 1
      // Predicated region
      $region13: #{_lambda_.8} parent=11 // pred_check
        %p153 = pneg %p84
      $region14: #{_lambda_.8} parent=11 // pred_check_branch
        %155 = sbr.rel (%p153) target = $region16
      $region15: #{_lambda_.8} parent=11 // pred_region
        %s156 = smul.u32 48, %s21
        %p157 = scmp.lt.s32.totalorder %s156, 47
        %s158 = scalar_select %p157, %s156, 47
        %p159 = scmp.lt.s32.totalorder %s20, 0
        %s160 = scalar_select %p159, %s20, 0
        %s161 = sadd.s32 %s160, %s158
        %s162 = smul.addr %s161, 4
        %s163 = scalar_lea.vmem %s1, %s162
        %s164 = smul.u32 48, %s21
      $region16: #{_lambda_.8} parent=11 // pred_fallthru
        _
      // Predicated region
      $region17: #{_lambda_.8} parent=11 // pred_check
        %p165 = pneg %p110
      $region18: #{_lambda_.8} parent=11 // pred_check_branch
        %167 = sbr.rel (%p165) target = $region20
      $region19: #{_lambda_.8} parent=11 // pred_region
        %p168 = scmp.lt.s32.totalorder %s20, 0
        %s169 = scalar_select %p168, %s20, 0
        %s170 = scalar_lea.vmem %s2, %s169
      $region20: #{_lambda_.8} parent=11 // pred_fallthru
        _
    $region12: #{_lambda_.8} parent=5 // pred_fallthru
      _
    %p171 = scmp.lt.s32.totalorder %s9, 4
    // Predicated region
    $region21: #{_lambda_.8} parent=5 // pred_check
      %p172 = pneg %p171
    $region22: #{_lambda_.8} parent=5 // pred_check_branch
      %174 = sbr.rel (%p172) target = $region24
    $region23: #{_lambda_.8} parent=5 // pred_region
      // Predicated region
      $region25: #{_lambda_.8} parent=23 // pred_check
        %p175 = pneg %p50
      $region26: #{_lambda_.8} parent=23 // pred_check_branch
        %177 = sbr.rel (%p175) target = $region28
      $region27: #{_lambda_.8} parent=23 // pred_region
        %s178 = smul.u32 16, %s16
        %s179 = smul.u32 3, %s18
        %p180 = scmp.lt.s32.totalorder %s178, 63
        %s181 = scalar_select %p180, %s178, 63
        %p182 = scmp.lt.s32.totalorder %s179, 2
        %s183 = scalar_select %p182, %s179, 2
        %s184 = smul.addr %s181, 3
        %s185 = sadd.s32 %s183, %s184
        %s186 = smul.addr %s185, 4
        %s187 = scalar_lea.vmem %s0, %s186
        %s188 = smul.u32 16, %s16
        %s189 = smul.u32 3, %s18
      $region28: #{_lambda_.8} parent=23 // pred_fallthru
        _
    $region24: #{_lambda_.8} parent=5 // pred_fallthru
      _
    %p190 = scmp.le.s32.totalorder 1, %s9
    %p191 = scmp.lt.s32.totalorder %s9, 5
    %p192 = pnand %p190, %p191
    %p193 = pneg %p192
    // Predicated region
    $region29: #{_lambda_.8} parent=5 // pred_check
      _
    $region30: #{_lambda_.8} parent=5 // pred_check_branch
      %195 = sbr.rel (%p192) target = $region32
    $region31: #{_lambda_.8} parent=5 // pred_region
      %s196 = ssub.s32 %s9, 1
      %s197 = smul.u32 16, %s19
      %s198 = smul.u32 3, %s21
      %p199 = scmp.lt.s32.totalorder %s197, 63
      %s200 = scalar_select %p199, %s197, 63
      %p201 = scmp.lt.s32.totalorder %s198, 2
      %s202 = scalar_select %p201, %s198, 2
      %s203 = smul.addr %s200, 3
      %s204 = sadd.s32 %s202, %s203
      %s205 = smul.addr %s204, 4
      %s206 = scalar_lea.vmem %s0, %s205
      %p207 = pneg %p56
      %p208 = pneg %p53
      %s209 = smul.u32 48, %s21
      %p210 = scmp.lt.s32.totalorder %s209, 47
      %s211 = scalar_select %p210, %s209, 47
      %p212 = scmp.lt.s32.totalorder %s20, 0
      %s213 = scalar_select %p212, %s20, 0
      %s214 = sadd.s32 %s213, %s211
      %s215 = smul.addr %s214, 4
      %s216 = scalar_lea.vmem %s1, %s215
      %p217 = pneg %p84
      %p218 = pneg %p81
      %p219 = scmp.lt.s32.totalorder %s20, 0
      %s220 = scalar_select %p219, %s20, 0
      %s221 = scalar_lea.vmem %s2, %s220
      %p222 = pneg %p110
      %p223 = pneg %p107
      %p224 = pneg %p138
      %p225 = pneg %p135
      %s226 = smul.u32 16, %s19
      %p227 = scmp.lt.s32.totalorder %s226, 63
      %s228 = scalar_select %p227, %s226, 63
      %p229 = scmp.lt.s32.totalorder %s20, 0
      %s230 = scalar_select %p229, %s20, 0
      %s231 = sadd.s32 %s230, %s228
      %s232 = smul.addr %s231, 8
      %s233 = scalar_lea.vmem %s3, %s232
      %s234 = smul.u32 16, %s19
      %s235 = smul.u32 3, %s21
      %p236 = scmp.lt.s32.totalorder %s234, 63
      %s237 = scalar_select %p236, %s234, 63
      %p238 = scmp.lt.s32.totalorder %s235, 2
      %s239 = scalar_select %p238, %s235, 2
      %s240 = smul.addr %s237, 3
      %s241 = sadd.s32 %s239, %s240
      %s242 = smul.addr %s241, 4
      %s243 = scalar_lea.vmem %s0, %s242
      %s244 = smul.u32 16, %s19
      %s245 = smul.u32 3, %s21
      %s246 = smul.u32 48, %s21
      %p247 = scmp.lt.s32.totalorder %s246, 47
      %s248 = scalar_select %p247, %s246, 47
      %p249 = scmp.lt.s32.totalorder %s20, 0
      %s250 = scalar_select %p249, %s20, 0
      %s251 = sadd.s32 %s250, %s248
      %s252 = smul.addr %s251, 4
      %s253 = scalar_lea.vmem %s1, %s252
      %s254 = smul.u32 48, %s21
      %p255 = scmp.lt.s32.totalorder %s20, 0
      %s256 = scalar_select %p255, %s20, 0
      %s257 = scalar_lea.vmem %s2, %s256
      %s258 = smul.u32 16, %s19
      %p259 = scmp.lt.s32.totalorder %s258, 63
      %s260 = scalar_select %p259, %s258, 63
      %p261 = scmp.lt.s32.totalorder %s20, 0
      %s262 = scalar_select %p261, %s20, 0
      %s263 = sadd.s32 %s262, %s260
      %s264 = smul.addr %s263, 8
      %s265 = scalar_lea.vmem %s3, %s264
      %s266 = smul.u32 16, %s19
      %v267 = vld [vmem:[%s243] sm:$0xff]
      %v268 = vld [vmem:[%s243 + $0x8] sm:$0xf]
      %v269 = vld [vmem:[%s243 + $0xc] sm:$0xff]
      %v270 = vld [vmem:[%s243 + $0x14] sm:$0xf]
      %v271 = vld [vmem:[%s243 + $0x18] sm:$0xff]
      %v272 = vld [vmem:[%s243 + $0x20] sm:$0xf]
      %v273 = vld [vmem:[%s243 + $0x24] sm:$0xff]
      %v274 = vld [vmem:[%s243 + $0x2c] sm:$0xf]
      %v275 = vld [vmem:[%s243 + $0x30] sm:$0xff]
      %v276 = vld [vmem:[%s243 + $0x38] sm:$0xf]
      %v277 = vld [vmem:[%s243 + $0x3c] sm:$0xff]
      %v278 = vld [vmem:[%s243 + $0x44] sm:$0xf]
      %v279 = vld [vmem:[%s243 + $0x48] sm:$0xff]
      %v280 = vld [vmem:[%s243 + $0x50] sm:$0xf]
      %v281 = vld [vmem:[%s243 + $0x54] sm:$0xff]
      %v282 = vld [vmem:[%s243 + $0x5c] sm:$0xf]
      %v283 = vld [vmem:[%s243 + $0x60] sm:$0xff]
      %v284 = vld [vmem:[%s243 + $0x68] sm:$0xf]
      %v285 = vld [vmem:[%s243 + $0x6c] sm:$0xff]
      %v286 = vld [vmem:[%s243 + $0x74] sm:$0xf]
      %v287 = vld [vmem:[%s243 + $0x78] sm:$0xff]
      %v288 = vld [vmem:[%s243 + $0x80] sm:$0xf]
      %v289 = vld [vmem:[%s243 + $0x84] sm:$0xff]
      %v290 = vld [vmem:[%s243 + $0x8c] sm:$0xf]
      %v291 = vld [vmem:[%s243 + $0x90] sm:$0xff]
      %v292 = vld [vmem:[%s243 + $0x98] sm:$0xf]
      %v293 = vld [vmem:[%s243 + $0x9c] sm:$0xff]
      %v294 = vld [vmem:[%s243 + $0xa4] sm:$0xf]
      %v295 = vld [vmem:[%s243 + $0xa8] sm:$0xff]
      %v296 = vld [vmem:[%s243 + $0xb0] sm:$0xf]
      %v297 = vld [vmem:[%s243 + $0xb4] sm:$0xff]
      %v298 = vld [vmem:[%s243 + $0xbc] sm:$0xf]
      %v299 = vld [vmem:[%s253] sm:$0xf]
      %v300 = vld [vmem:[%s253 + $0x4] sm:$0xf]
      %v301 = vld [vmem:[%s253 + $0x8] sm:$0xf]
      %v302 = vld [vmem:[%s253 + $0xc] sm:$0xf]
      %v303 = vld [vmem:[%s253 + $0x10] sm:$0xf]
      %v304 = vld [vmem:[%s253 + $0x14] sm:$0xf]
      %v305 = vld [vmem:[%s253 + $0x18] sm:$0xf]
      %v306 = vld [vmem:[%s253 + $0x1c] sm:$0xf]
      %v307 = vld [vmem:[%s253 + $0x20] sm:$0xf]
      %v308 = vld [vmem:[%s253 + $0x24] sm:$0xf]
      %v309 = vld [vmem:[%s253 + $0x28] sm:$0xf]
      %v310 = vld [vmem:[%s253 + $0x2c] sm:$0xf]
      %v311 = vld [vmem:[%s253 + $0x30] sm:$0xf]
      %v312 = vld [vmem:[%s253 + $0x34] sm:$0xf]
      %v313 = vld [vmem:[%s253 + $0x38] sm:$0xf]
      %v314 = vld [vmem:[%s253 + $0x3c] sm:$0xf]
      %v315 = vld [vmem:[%s253 + $0x40] sm:$0xf]
      %v316 = vld [vmem:[%s253 + $0x44] sm:$0xf]
      %v317 = vld [vmem:[%s253 + $0x48] sm:$0xf]
      %v318 = vld [vmem:[%s253 + $0x4c] sm:$0xf]
      %v319 = vld [vmem:[%s253 + $0x50] sm:$0xf]
      %v320 = vld [vmem:[%s253 + $0x54] sm:$0xf]
      %v321 = vld [vmem:[%s253 + $0x58] sm:$0xf]
      %v322 = vld [vmem:[%s253 + $0x5c] sm:$0xf]
      %v323 = vld [vmem:[%s253 + $0x60] sm:$0xf]
      %v324 = vld [vmem:[%s253 + $0x64] sm:$0xf]
      %v325 = vld [vmem:[%s253 + $0x68] sm:$0xf]
      %v326 = vld [vmem:[%s253 + $0x6c] sm:$0xf]
      %v327 = vld [vmem:[%s253 + $0x70] sm:$0xf]
      %v328 = vld [vmem:[%s253 + $0x74] sm:$0xf]
      %v329 = vld [vmem:[%s253 + $0x78] sm:$0xf]
      %v330 = vld [vmem:[%s253 + $0x7c] sm:$0xf]
      %v331 = vld [vmem:[%s253 + $0x80] sm:$0xf]
      %v332 = vld [vmem:[%s253 + $0x84] sm:$0xf]
      %v333 = vld [vmem:[%s253 + $0x88] sm:$0xf]
      %v334 = vld [vmem:[%s253 + $0x8c] sm:$0xf]
      %v335 = vld [vmem:[%s253 + $0x90] sm:$0xf]
      %v336 = vld [vmem:[%s253 + $0x94] sm:$0xf]
      %v337 = vld [vmem:[%s253 + $0x98] sm:$0xf]
      %v338 = vld [vmem:[%s253 + $0x9c] sm:$0xf]
      %v339 = vld [vmem:[%s253 + $0xa0] sm:$0xf]
      %v340 = vld [vmem:[%s253 + $0xa4] sm:$0xf]
      %v341 = vld [vmem:[%s253 + $0xa8] sm:$0xf]
      %v342 = vld [vmem:[%s253 + $0xac] sm:$0xf]
      %v343 = vld [vmem:[%s253 + $0xb0] sm:$0xf]
      %v344 = vld [vmem:[%s253 + $0xb4] sm:$0xf]
      %v345 = vld [vmem:[%s253 + $0xb8] sm:$0xf]
      %v346 = vld [vmem:[%s253 + $0xbc] sm:$0xf]
      %v347 = vld [vmem:[%s257] sm:$0x1]
      %v349 = vperm.slane %v347, 0
      %v383 = vunpack.c.l.b16 %v267
      %v384 = vunpack.c.h.b16 %v267
      %v385 = vunpack.c.l.b16 %v268
      %v386 = vunpack.c.l.b16 %v269
      %v387 = vunpack.c.h.b16 %v269
      %v388 = vunpack.c.l.b16 %v270
      %v389 = vunpack.c.l.b16 %v271
      %v390 = vunpack.c.h.b16 %v271
      %v391 = vunpack.c.l.b16 %v272
      %v392 = vunpack.c.l.b16 %v273
      %v393 = vunpack.c.h.b16 %v273
      %v394 = vunpack.c.l.b16 %v274
      %v395 = vunpack.c.l.b16 %v275
      %v396 = vunpack.c.h.b16 %v275
      %v397 = vunpack.c.l.b16 %v276
      %v398 = vunpack.c.l.b16 %v277
      %v399 = vunpack.c.h.b16 %v277
      %v400 = vunpack.c.l.b16 %v278
      %v401 = vunpack.c.l.b16 %v279
      %v402 = vunpack.c.h.b16 %v279
      %v403 = vunpack.c.l.b16 %v280
      %v404 = vunpack.c.l.b16 %v281
      %v405 = vunpack.c.h.b16 %v281
      %v406 = vunpack.c.l.b16 %v282
      %v407 = vunpack.c.l.b16 %v283
      %v408 = vunpack.c.h.b16 %v283
      %v409 = vunpack.c.l.b16 %v284
      %v410 = vunpack.c.l.b16 %v285
      %v411 = vunpack.c.h.b16 %v285
      %v412 = vunpack.c.l.b16 %v286
      %v413 = vunpack.c.l.b16 %v287
      %v414 = vunpack.c.h.b16 %v287
      %v415 = vunpack.c.l.b16 %v288
      %v416 = vunpack.c.l.b16 %v289
      %v417 = vunpack.c.h.b16 %v289
      %v418 = vunpack.c.l.b16 %v290
      %v419 = vunpack.c.l.b16 %v291
      %v420 = vunpack.c.h.b16 %v291
      %v421 = vunpack.c.l.b16 %v292
      %v422 = vunpack.c.l.b16 %v293
      %v423 = vunpack.c.h.b16 %v293
      %v424 = vunpack.c.l.b16 %v294
      %v425 = vunpack.c.l.b16 %v295
      %v426 = vunpack.c.h.b16 %v295
      %v427 = vunpack.c.l.b16 %v296
      %v428 = vunpack.c.l.b16 %v297
      %v429 = vunpack.c.h.b16 %v297
      %v430 = vunpack.c.l.b16 %v298
      %v431 = vpack.c.b16 %v386, %v383
      %v432 = vpack.c.b16 %v387, %v384
      %v433 = vpack.c.b16 %v388, %v385
      %v434 = vpack.c.b16 %v392, %v389
      %v435 = vpack.c.b16 %v393, %v390
      %v436 = vpack.c.b16 %v394, %v391
      %v437 = vpack.c.b16 %v398, %v395
      %v438 = vpack.c.b16 %v399, %v396
      %v439 = vpack.c.b16 %v400, %v397
      %v440 = vpack.c.b16 %v404, %v401
      %v441 = vpack.c.b16 %v405, %v402
      %v442 = vpack.c.b16 %v406, %v403
      %v443 = vpack.c.b16 %v410, %v407
      %v444 = vpack.c.b16 %v411, %v408
      %v445 = vpack.c.b16 %v412, %v409
      %v446 = vpack.c.b16 %v416, %v413
      %v447 = vpack.c.b16 %v417, %v414
      %v448 = vpack.c.b16 %v418, %v415
      %v449 = vpack.c.b16 %v422, %v419
      %v450 = vpack.c.b16 %v423, %v420
      %v451 = vpack.c.b16 %v424, %v421
      %v452 = vpack.c.b16 %v428, %v425
      %v453 = vpack.c.b16 %v429, %v426
      %v454 = vpack.c.b16 %v430, %v427
      %v527 = vunpack.c.l.b16 %v299
      %v528 = vunpack.c.l.b16 %v300
      %v529 = vunpack.c.l.b16 %v301
      %v530 = vunpack.c.l.b16 %v302
      %v531 = vunpack.c.l.b16 %v303
      %v532 = vunpack.c.l.b16 %v304
      %v533 = vunpack.c.l.b16 %v305
      %v534 = vunpack.c.l.b16 %v306
      %v535 = vunpack.c.l.b16 %v307
      %v536 = vunpack.c.l.b16 %v308
      %v537 = vunpack.c.l.b16 %v309
      %v538 = vunpack.c.l.b16 %v310
      %v539 = vunpack.c.l.b16 %v311
      %v540 = vunpack.c.l.b16 %v312
      %v541 = vunpack.c.l.b16 %v313
      %v542 = vunpack.c.l.b16 %v314
      %v543 = vunpack.c.l.b16 %v315
      %v544 = vunpack.c.l.b16 %v316
      %v545 = vunpack.c.l.b16 %v317
      %v546 = vunpack.c.l.b16 %v318
      %v547 = vunpack.c.l.b16 %v319
      %v548 = vunpack.c.l.b16 %v320
      %v549 = vunpack.c.l.b16 %v321
      %v550 = vunpack.c.l.b16 %v322
      %v551 = vunpack.c.l.b16 %v323
      %v552 = vunpack.c.l.b16 %v324
      %v553 = vunpack.c.l.b16 %v325
      %v554 = vunpack.c.l.b16 %v326
      %v555 = vunpack.c.l.b16 %v327
      %v556 = vunpack.c.l.b16 %v328
      %v557 = vunpack.c.l.b16 %v329
      %v558 = vunpack.c.l.b16 %v330
      %v559 = vunpack.c.l.b16 %v331
      %v560 = vunpack.c.l.b16 %v332
      %v561 = vunpack.c.l.b16 %v333
      %v562 = vunpack.c.l.b16 %v334
      %v563 = vunpack.c.l.b16 %v335
      %v564 = vunpack.c.l.b16 %v336
      %v565 = vunpack.c.l.b16 %v337
      %v566 = vunpack.c.l.b16 %v338
      %v567 = vunpack.c.l.b16 %v339
      %v568 = vunpack.c.l.b16 %v340
      %v569 = vunpack.c.l.b16 %v341
      %v570 = vunpack.c.l.b16 %v342
      %v571 = vunpack.c.l.b16 %v343
      %v572 = vunpack.c.l.b16 %v344
      %v573 = vunpack.c.l.b16 %v345
      %v574 = vunpack.c.l.b16 %v346
      %v575 = vpack.c.b16 %v528, %v527
      %v576 = vpack.c.b16 %v530, %v529
      %v577 = vpack.c.b16 %v532, %v531
      %v578 = vpack.c.b16 %v534, %v533
      %v579 = vpack.c.b16 %v536, %v535
      %v580 = vpack.c.b16 %v538, %v537
      %v581 = vpack.c.b16 %v540, %v539
      %v582 = vpack.c.b16 %v542, %v541
      %v583 = vpack.c.b16 %v544, %v543
      %v584 = vpack.c.b16 %v546, %v545
      %v585 = vpack.c.b16 %v548, %v547
      %v586 = vpack.c.b16 %v550, %v549
      %v587 = vpack.c.b16 %v552, %v551
      %v588 = vpack.c.b16 %v554, %v553
      %v589 = vpack.c.b16 %v556, %v555
      %v590 = vpack.c.b16 %v558, %v557
      %v591 = vpack.c.b16 %v560, %v559
      %v592 = vpack.c.b16 %v562, %v561
      %v593 = vpack.c.b16 %v564, %v563
      %v594 = vpack.c.b16 %v566, %v565
      %v595 = vpack.c.b16 %v568, %v567
      %v596 = vpack.c.b16 %v570, %v569
      %v597 = vpack.c.b16 %v572, %v571
      %v598 = vpack.c.b16 %v574, %v573
      %623 = vmatpush.bf16.msra.mxu0 %v582
      %624 = vmatpush.bf16.msra.mxu0 %v581
      %625 = vmatpush.bf16.msra.mxu0 %v580
      %626 = vmatpush.bf16.msra.mxu0 %v579
      %627 = vmatpush.bf16.msra.mxu0 %v578
      %628 = vmatpush.bf16.msra.mxu0 %v577
      %629 = vmatpush.bf16.msra.mxu0 %v576
      %630 = vmatpush.bf16.msra.mxu0 %v575
      %631 = vmatmul.bf16.gmra.mxu0 %v431
      %v632 = vpop.f32.mrf.mxu0
      %v633 = vadd.f32 %v349, %v632
      %v634 = vpop.f32.mrf.mxu0
      %v635 = vadd.f32 %v349, %v634
      %636 = vmatmul.bf16.gmra.mxu0 %v434
      %v637 = vpop.f32.mrf.mxu0
      %v638 = vadd.f32 %v349, %v637
      %v639 = vpop.f32.mrf.mxu0
      %v640 = vadd.f32 %v349, %v639
      %641 = vmatmul.bf16.gmra.mxu0 %v437
      %v642 = vpop.f32.mrf.mxu0
      %v643 = vadd.f32 %v349, %v642
      %v644 = vpop.f32.mrf.mxu0
      %v645 = vadd.f32 %v349, %v644
      %646 = vmatmul.bf16.gmra.mxu0 %v440
      %v647 = vpop.f32.mrf.mxu0
      %v648 = vadd.f32 %v349, %v647
      %v649 = vpop.f32.mrf.mxu0
      %v650 = vadd.f32 %v349, %v649
      %651 = vmatmul.bf16.gmra.mxu0 %v443
      %v652 = vpop.f32.mrf.mxu0
      %v653 = vadd.f32 %v349, %v652
      %v654 = vpop.f32.mrf.mxu0
      %v655 = vadd.f32 %v349, %v654
      %656 = vmatmul.bf16.gmra.mxu0 %v446
      %v657 = vpop.f32.mrf.mxu0
      %v658 = vadd.f32 %v349, %v657
      %v659 = vpop.f32.mrf.mxu0
      %v660 = vadd.f32 %v349, %v659
      %661 = vmatmul.bf16.gmra.mxu0 %v449
      %v662 = vpop.f32.mrf.mxu0
      %v663 = vadd.f32 %v349, %v662
      %v664 = vpop.f32.mrf.mxu0
      %v665 = vadd.f32 %v349, %v664
      %666 = vmatmul.bf16.gmra.mxu0 %v452
      %v667 = vpop.f32.mrf.mxu0
      %v668 = vadd.f32 %v349, %v667
      %v669 = vpop.f32.mrf.mxu0
      %v670 = vadd.f32 %v349, %v669
      %671 = vdwg.mxu0
      %672 = vmatpush.bf16.msra.mxu0 %v590
      %673 = vmatpush.bf16.msra.mxu0 %v589
      %674 = vmatpush.bf16.msra.mxu0 %v588
      %675 = vmatpush.bf16.msra.mxu0 %v587
      %676 = vmatpush.bf16.msra.mxu0 %v586
      %677 = vmatpush.bf16.msra.mxu0 %v585
      %678 = vmatpush.bf16.msra.mxu0 %v584
      %679 = vmatpush.bf16.msra.mxu0 %v583
      %680 = vmatmul.bf16.gmra.mxu0 %v432
      %v681 = vpop.f32.mrf.mxu0
      %v682 = vadd.f32 %v633, %v681
      %v683 = vpop.f32.mrf.mxu0
      %v684 = vadd.f32 %v635, %v683
      %685 = vmatmul.bf16.gmra.mxu0 %v435
      %v686 = vpop.f32.mrf.mxu0
      %v687 = vadd.f32 %v638, %v686
      %v688 = vpop.f32.mrf.mxu0
      %v689 = vadd.f32 %v640, %v688
      %690 = vmatmul.bf16.gmra.mxu0 %v438
      %v691 = vpop.f32.mrf.mxu0
      %v692 = vadd.f32 %v643, %v691
      %v693 = vpop.f32.mrf.mxu0
      %v694 = vadd.f32 %v645, %v693
      %695 = vmatmul.bf16.gmra.mxu0 %v441
      %v696 = vpop.f32.mrf.mxu0
      %v697 = vadd.f32 %v648, %v696
      %v698 = vpop.f32.mrf.mxu0
      %v699 = vadd.f32 %v650, %v698
      %700 = vmatmul.bf16.gmra.mxu0 %v444
      %v701 = vpop.f32.mrf.mxu0
      %v702 = vadd.f32 %v653, %v701
      %v703 = vpop.f32.mrf.mxu0
      %v704 = vadd.f32 %v655, %v703
      %705 = vmatmul.bf16.gmra.mxu0 %v447
      %v706 = vpop.f32.mrf.mxu0
      %v707 = vadd.f32 %v658, %v706
      %v708 = vpop.f32.mrf.mxu0
      %v709 = vadd.f32 %v660, %v708
      %710 = vmatmul.bf16.gmra.mxu0 %v450
      %v711 = vpop.f32.mrf.mxu0
      %v712 = vadd.f32 %v663, %v711
      %v713 = vpop.f32.mrf.mxu0
      %v714 = vadd.f32 %v665, %v713
      %715 = vmatmul.bf16.gmra.mxu0 %v453
      %v716 = vpop.f32.mrf.mxu0
      %v717 = vadd.f32 %v668, %v716
      %v718 = vpop.f32.mrf.mxu0
      %v719 = vadd.f32 %v670, %v718
      %720 = vdwg.mxu0
      %721 = vmatpush.bf16.msra.mxu0 %v598
      %722 = vmatpush.bf16.msra.mxu0 %v597
      %723 = vmatpush.bf16.msra.mxu0 %v596
      %724 = vmatpush.bf16.msra.mxu0 %v595
      %725 = vmatpush.bf16.msra.mxu0 %v594
      %726 = vmatpush.bf16.msra.mxu0 %v593
      %727 = vmatpush.bf16.msra.mxu0 %v592
      %728 = vmatpush.bf16.msra.mxu0 %v591
      %729 = vmatmul.bf16.gmra.mxu0 %v433
      %v730 = vpop.f32.mrf.mxu0
      %v731 = vadd.f32 %v682, %v730
      %v732 = vpop.f32.mrf.mxu0
      %v733 = vadd.f32 %v684, %v732
      %734 = vmatmul.bf16.gmra.mxu0 %v436
      %v735 = vpop.f32.mrf.mxu0
      %v736 = vadd.f32 %v687, %v735
      %v737 = vpop.f32.mrf.mxu0
      %v738 = vadd.f32 %v689, %v737
      %739 = vmatmul.bf16.gmra.mxu0 %v439
      %v740 = vpop.f32.mrf.mxu0
      %v741 = vadd.f32 %v692, %v740
      %v742 = vpop.f32.mrf.mxu0
      %v743 = vadd.f32 %v694, %v742
      %744 = vmatmul.bf16.gmra.mxu0 %v442
      %v745 = vpop.f32.mrf.mxu0
      %v746 = vadd.f32 %v697, %v745
      %v747 = vpop.f32.mrf.mxu0
      %v748 = vadd.f32 %v699, %v747
      %749 = vmatmul.bf16.gmra.mxu0 %v445
      %v750 = vpop.f32.mrf.mxu0
      %v751 = vadd.f32 %v702, %v750
      %v752 = vpop.f32.mrf.mxu0
      %v753 = vadd.f32 %v704, %v752
      %754 = vmatmul.bf16.gmra.mxu0 %v448
      %v755 = vpop.f32.mrf.mxu0
      %v756 = vadd.f32 %v707, %v755
      %v757 = vpop.f32.mrf.mxu0
      %v758 = vadd.f32 %v709, %v757
      %759 = vmatmul.bf16.gmra.mxu0 %v451
      %v760 = vpop.f32.mrf.mxu0
      %v761 = vadd.f32 %v712, %v760
      %v762 = vpop.f32.mrf.mxu0
      %v763 = vadd.f32 %v714, %v762
      %764 = vmatmul.bf16.gmra.mxu0 %v454
      %v765 = vpop.f32.mrf.mxu0
      %v766 = vadd.f32 %v717, %v765
      %v767 = vpop.f32.mrf.mxu0
      %v768 = vadd.f32 %v719, %v767
      %769 = vdwg.mxu0
      %v770 = vmax.f32 %v731, 0.0
      %v771 = vmax.f32 %v733, 0.0
      %v772 = vmax.f32 %v736, 0.0
      %v773 = vmax.f32 %v738, 0.0
      %v774 = vmax.f32 %v741, 0.0
      %v775 = vmax.f32 %v743, 0.0
      %v776 = vmax.f32 %v746, 0.0
      %v777 = vmax.f32 %v748, 0.0
      %v778 = vmax.f32 %v751, 0.0
      %v779 = vmax.f32 %v753, 0.0
      %v780 = vmax.f32 %v756, 0.0
      %v781 = vmax.f32 %v758, 0.0
      %v782 = vmax.f32 %v761, 0.0
      %v783 = vmax.f32 %v763, 0.0
      %v784 = vmax.f32 %v766, 0.0
      %v785 = vmax.f32 %v768, 0.0
      %786 = vst [vmem:[%s265] sm:$0xff] %v770
      %787 = vst [vmem:[%s265 + $0x8] sm:$0xff] %v771
      %788 = vst [vmem:[%s265 + $0x10] sm:$0xff] %v772
      %789 = vst [vmem:[%s265 + $0x18] sm:$0xff] %v773
      %790 = vst [vmem:[%s265 + $0x20] sm:$0xff] %v774
      %791 = vst [vmem:[%s265 + $0x28] sm:$0xff] %v775
      %792 = vst [vmem:[%s265 + $0x30] sm:$0xff] %v776
      %793 = vst [vmem:[%s265 + $0x38] sm:$0xff] %v777
      %794 = vst [vmem:[%s265 + $0x40] sm:$0xff] %v778
      %795 = vst [vmem:[%s265 + $0x48] sm:$0xff] %v779
      %796 = vst [vmem:[%s265 + $0x50] sm:$0xff] %v780
      %797 = vst [vmem:[%s265 + $0x58] sm:$0xff] %v781
      %798 = vst [vmem:[%s265 + $0x60] sm:$0xff] %v782
      %799 = vst [vmem:[%s265 + $0x68] sm:$0xff] %v783
      %800 = vst [vmem:[%s265 + $0x70] sm:$0xff] %v784
      %801 = vst [vmem:[%s265 + $0x78] sm:$0xff] %v785
      %s802 = smul.u32 16, %s19
      %p803 = scmp.lt.s32.totalorder %s802, 63
      %s804 = scalar_select %p803, %s802, 63
      %p805 = scmp.lt.s32.totalorder %s20, 0
      %s806 = scalar_select %p805, %s20, 0
      %s807 = sadd.s32 %s806, %s804
      %s808 = smul.addr %s807, 8
      %s809 = scalar_lea.vmem %s3, %s808
      // Predicated region
      $region33: #{_lambda_.8} parent=31 // pred_check
        %p810 = pneg %p135
      $region34: #{_lambda_.8} parent=31 // pred_check_branch
        %812 = sbr.rel (%p810) target = $region36
      $region35: #{_lambda_.8} parent=31 // pred_region
        %s813 = smul.u32 16, %s19
      $region36: #{_lambda_.8} parent=31 // pred_fallthru
        _
    $region32: #{_lambda_.8} parent=5 // pred_fallthru
      _
    %p814 = scmp.le.s32.totalorder 2, %s9
    // Predicated region
    $region37: #{_lambda_.8} parent=5 // pred_check
      %p815 = pneg %p814
    $region38: #{_lambda_.8} parent=5 // pred_check_branch
      %817 = sbr.rel (%p815) target = $region40
    $region39: #{_lambda_.8} parent=5 // pred_region
      %s818 = ssub.s32 %s9, 2
      // Predicated region
      $region41: #{_lambda_.8} parent=39 // pred_check
        %p819 = pneg %p141
      $region42: #{_lambda_.8} parent=39 // pred_check_branch
        %821 = sbr.rel (%p819) target = $region44
      $region43: #{_lambda_.8} parent=39 // pred_region
        %s822 = smul.u32 16, %s22
        %p823 = scmp.lt.s32.totalorder %s822, 63
        %s824 = scalar_select %p823, %s822, 63
        %p825 = scmp.lt.s32.totalorder %s23, 0
        %s826 = scalar_select %p825, %s23, 0
        %s827 = sadd.s32 %s826, %s824
        %s828 = smul.addr %s827, 8
        %s829 = scalar_lea.vmem %s3, %s828
      $region44: #{_lambda_.8} parent=39 // pred_fallthru
        _
    $region40: #{_lambda_.8} parent=5 // pred_fallthru
      _
  $region6: #{_lambda_.8} parent=0 // loop_footer
    %s13 = sadd.s32 1, %s9
  $region7: #{_lambda_.8} parent=0 // loop_footer_branch
    %8 = sbr.rel target = $region3
  $region8: #{_lambda_.8} parent=0 // loop_exit
    _

// kernel: _lambda_.9
$region0: #{_lambda_.9}
  #allocation0 [shape = 'u32[]', space=smem, size = 0x4, offset = 0x4, fixed_abs, tag = 'smem constant byte address 0x4 - core index']
  #allocation1 [shape = 'u32[72,128]{1,0:T(1,128)}', space=vmem, size = 0x9000, scoped, tag = 'internal scratch']
  %s0 = inlined_call_operand.vmem [shape: bf16[512,128], index: 0, kind: input, shape index: {}]
  %s1 = inlined_call_operand.vmem [shape: bf16[128,128], index: 1, kind: input, shape index: {}]
  %s2 = inlined_call_operand.vmem [shape: f32[1,128], index: 2, kind: input, shape index: {}]
  %s3 = inlined_call_operand.vmem [shape: f32[512,128], index: 3, kind: output, shape index: {}]
  %s4 = sld [smem:[#allocation0]]
  $region45: #{_lambda_.9} parent=0
    _
  %s6 = ssub.s32 1, %s4
  %s7 = scalar_select 0, %s6, %s4
  loop: start=0, step=1, limit=6
  $region2: #{_lambda_.9} parent=0 // loop_pre_header
    _
  $region3: #{_lambda_.9} parent=0 // loop_header
    %s9 = sphi 0, %s13
    %p10 = scmp.ge.s32.totalorder %s9, 6
    %s16 = sphi 0, %s35
    %s17 = sphi 0, %s31
    %s18 = sphi 0, %s27
    %s19 = sphi 0, %s16
    %s20 = sphi 0, %s17
    %s21 = sphi 0, %s18
    %s22 = sphi 0, %s19
    %s23 = sphi 0, %s20
    %s24 = sphi 0, %s21
    %s40 = sphi 0, %s42
    %s43 = sphi 0, %s40
    %s44 = sphi 0, %s43
    %s60 = sphi 0, %s44
    %s68 = sphi 0, %s70
    %s71 = sphi 0, %s68
    %s72 = sphi 0, %s71
    %s88 = sphi 0, %s72
    %s94 = sphi 0, %s96
    %s97 = sphi 0, %s94
    %s98 = sphi 0, %s97
    %s114 = sphi 0, %s98
    %s122 = sphi 0, %s124
    %s125 = sphi 0, %s122
    %s126 = sphi 0, %s125
    %s142 = sphi 0, %s126
  $region4: #{_lambda_.9} parent=0 // loop_header_branch
    %12 = sbr.rel (%p10) target = $region8
  $region5: #{_lambda_.9} parent=0 // loop_body
    %s14 = ssub.s32 %s9, 1
    %s15 = ssub.s32 %s9, 2
    %s25 = sadd.s32 1, %s18
    %p26 = scmp.ge.s32.totalorder %s25, 1
    %s27 = scalar_select %p26, 0, %s25
    %s28 = sadd.s32 1, %s17
    %s29 = scalar_select %p26, %s28, %s17
    %p30 = scmp.ge.s32.totalorder %s29, 1
    %s31 = scalar_select %p30, 0, %s29
    %s32 = sadd.s32 1, %s16
    %s33 = scalar_select %p30, %s32, %s16
    %p34 = scmp.ge.s32.totalorder %s33, 4
    %s35 = scalar_select %p34, 0, %s33
    %s36 = ssub.s32 %s16, %s35
    %s37 = ssub.s32 %s18, %s27
    %s38 = sor.u32 %s36, %s37
    %p39 = scmp.eq.s32.totalorder %s38, 0
    %s41 = sadd.s32 %s40, 1
    %s42 = scalar_select %p39, %s40, %s41
    %p45 = pneg %p39
    %p46 = scmp.eq.s32.totalorder %s9, 3
    %p47 = por %p45, %p46
    %p48 = scmp.ne.s32.totalorder %s40, %s43
    %p49 = scmp.eq.s32.totalorder %s9, 0
    %p50 = por %p48, %p49
    %p51 = scmp.ne.s32.totalorder %s40, %s43
    %p52 = scmp.eq.s32.totalorder %s14, 3
    %p53 = por %p51, %p52
    %p54 = scmp.ne.s32.totalorder %s43, %s44
    %p55 = scmp.eq.s32.totalorder %s14, 0
    %p56 = por %p54, %p55
    %p57 = scmp.ne.s32.totalorder %s43, %s44
    %p58 = scmp.eq.s32.totalorder %s15, 3
    %p59 = por %p57, %p58
    %p61 = scmp.ne.s32.totalorder %s44, %s60
    %p62 = scmp.eq.s32.totalorder %s15, 0
    %p63 = por %p61, %p62
    %s64 = ssub.s32 %s18, %s27
    %s65 = ssub.s32 %s17, %s31
    %s66 = sor.u32 %s64, %s65
    %p67 = scmp.eq.s32.totalorder %s66, 0
    %s69 = sadd.s32 %s68, 1
    %s70 = scalar_select %p67, %s68, %s69
    %p73 = pneg %p67
    %p74 = scmp.eq.s32.totalorder %s9, 3
    %p75 = por %p73, %p74
    %p76 = scmp.ne.s32.totalorder %s68, %s71
    %p77 = scmp.eq.s32.totalorder %s9, 0
    %p78 = por %p76, %p77
    %p79 = scmp.ne.s32.totalorder %s68, %s71
    %p80 = scmp.eq.s32.totalorder %s14, 3
    %p81 = por %p79, %p80
    %p82 = scmp.ne.s32.totalorder %s71, %s72
    %p83 = scmp.eq.s32.totalorder %s14, 0
    %p84 = por %p82, %p83
    %p85 = scmp.ne.s32.totalorder %s71, %s72
    %p86 = scmp.eq.s32.totalorder %s15, 3
    %p87 = por %p85, %p86
    %p89 = scmp.ne.s32.totalorder %s72, %s88
    %p90 = scmp.eq.s32.totalorder %s15, 0
    %p91 = por %p89, %p90
    %s92 = ssub.s32 %s17, %s31
    %p93 = scmp.eq.s32.totalorder %s92, 0
    %s95 = sadd.s32 %s94, 1
    %s96 = scalar_select %p93, %s94, %s95
    %p99 = pneg %p93
    %p100 = scmp.eq.s32.totalorder %s9, 3
    %p101 = por %p99, %p100
    %p102 = scmp.ne.s32.totalorder %s94, %s97
    %p103 = scmp.eq.s32.totalorder %s9, 0
    %p104 = por %p102, %p103
    %p105 = scmp.ne.s32.totalorder %s94, %s97
    %p106 = scmp.eq.s32.totalorder %s14, 3
    %p107 = por %p105, %p106
    %p108 = scmp.ne.s32.totalorder %s97, %s98
    %p109 = scmp.eq.s32.totalorder %s14, 0
    %p110 = por %p108, %p109
    %p111 = scmp.ne.s32.totalorder %s97, %s98
    %p112 = scmp.eq.s32.totalorder %s15, 3
    %p113 = por %p111, %p112
    %p115 = scmp.ne.s32.totalorder %s98, %s114
    %p116 = scmp.eq.s32.totalorder %s15, 0
    %p117 = por %p115, %p116
    %s118 = ssub.s32 %s16, %s35
    %s119 = ssub.s32 %s17, %s31
    %s120 = sor.u32 %s118, %s119
    %p121 = scmp.eq.s32.totalorder %s120, 0
    %s123 = sadd.s32 %s122, 1
    %s124 = scalar_select %p121, %s122, %s123
    %p127 = pneg %p121
    %p128 = scmp.eq.s32.totalorder %s9, 3
    %p129 = por %p127, %p128
    %p130 = scmp.ne.s32.totalorder %s122, %s125
    %p131 = scmp.eq.s32.totalorder %s9, 0
    %p132 = por %p130, %p131
    %p133 = scmp.ne.s32.totalorder %s122, %s125
    %p134 = scmp.eq.s32.totalorder %s14, 3
    %p135 = por %p133, %p134
    %p136 = scmp.ne.s32.totalorder %s125, %s126
    %p137 = scmp.eq.s32.totalorder %s14, 0
    %p138 = por %p136, %p137
    %p139 = scmp.ne.s32.totalorder %s125, %s126
    %p140 = scmp.eq.s32.totalorder %s15, 3
    %p141 = por %p139, %p140
    %p143 = scmp.ne.s32.totalorder %s126, %s142
    %p144 = scmp.eq.s32.totalorder %s15, 0
    %p145 = por %p143, %p144
    %p146 = scmp.le.s32.totalorder 1, %s9
    %p147 = scmp.lt.s32.totalorder %s9, 5
    %p148 = pnand %p146, %p147
    %p149 = pneg %p148
    // Predicated region
    $region9: #{_lambda_.9} parent=5 // pred_check
      _
    $region10: #{_lambda_.9} parent=5 // pred_check_branch
      %151 = sbr.rel (%p148) target = $region12
    $region11: #{_lambda_.9} parent=5 // pred_region
      %s152 = ssub.s32 %s9, 1
      // Predicated region
      $region13: #{_lambda_.9} parent=11 // pred_check
        %p153 = pneg %p84
      $region14: #{_lambda_.9} parent=11 // pred_check_branch
        %155 = sbr.rel (%p153) target = $region16
      $region15: #{_lambda_.9} parent=11 // pred_region
        %s156 = smul.u32 16, %s21
        %p157 = scmp.lt.s32.totalorder %s156, 15
        %s158 = scalar_select %p157, %s156, 15
        %p159 = scmp.lt.s32.totalorder %s20, 0
        %s160 = scalar_select %p159, %s20, 0
        %s161 = sadd.s32 %s160, %s158
        %s162 = smul.addr %s161, 4
        %s163 = scalar_lea.vmem %s1, %s162
        %s164 = smul.u32 16, %s21
      $region16: #{_lambda_.9} parent=11 // pred_fallthru
        _
      // Predicated region
      $region17: #{_lambda_.9} parent=11 // pred_check
        %p165 = pneg %p110
      $region18: #{_lambda_.9} parent=11 // pred_check_branch
        %167 = sbr.rel (%p165) target = $region20
      $region19: #{_lambda_.9} parent=11 // pred_region
        %p168 = scmp.lt.s32.totalorder %s20, 0
        %s169 = scalar_select %p168, %s20, 0
        %s170 = scalar_lea.vmem %s2, %s169
      $region20: #{_lambda_.9} parent=11 // pred_fallthru
        _
    $region12: #{_lambda_.9} parent=5 // pred_fallthru
      _
    %p171 = scmp.lt.s32.totalorder %s9, 4
    // Predicated region
    $region21: #{_lambda_.9} parent=5 // pred_check
      %p172 = pneg %p171
    $region22: #{_lambda_.9} parent=5 // pred_check_branch
      %174 = sbr.rel (%p172) target = $region24
    $region23: #{_lambda_.9} parent=5 // pred_region
      // Predicated region
      $region25: #{_lambda_.9} parent=23 // pred_check
        %p175 = pneg %p50
      $region26: #{_lambda_.9} parent=23 // pred_check_branch
        %177 = sbr.rel (%p175) target = $region28
      $region27: #{_lambda_.9} parent=23 // pred_region
        %s178 = smul.u32 16, %s16
        %p179 = scmp.lt.s32.totalorder %s178, 63
        %s180 = scalar_select %p179, %s178, 63
        %p181 = scmp.lt.s32.totalorder %s18, 0
        %s182 = scalar_select %p181, %s18, 0
        %s183 = sadd.s32 %s182, %s180
        %s184 = smul.addr %s183, 4
        %s185 = scalar_lea.vmem %s0, %s184
        %s186 = smul.u32 16, %s16
      $region28: #{_lambda_.9} parent=23 // pred_fallthru
        _
    $region24: #{_lambda_.9} parent=5 // pred_fallthru
      _
    %p187 = scmp.le.s32.totalorder 1, %s9
    %p188 = scmp.lt.s32.totalorder %s9, 5
    %p189 = pnand %p187, %p188
    %p190 = pneg %p189
    // Predicated region
    $region29: #{_lambda_.9} parent=5 // pred_check
      _
    $region30: #{_lambda_.9} parent=5 // pred_check_branch
      %192 = sbr.rel (%p189) target = $region32
    $region31: #{_lambda_.9} parent=5 // pred_region
      %s193 = ssub.s32 %s9, 1
      %s194 = smul.u32 16, %s19
      %p195 = scmp.lt.s32.totalorder %s194, 63
      %s196 = scalar_select %p195, %s194, 63
      %p197 = scmp.lt.s32.totalorder %s21, 0
      %s198 = scalar_select %p197, %s21, 0
      %s199 = sadd.s32 %s198, %s196
      %s200 = smul.addr %s199, 4
      %s201 = scalar_lea.vmem %s0, %s200
      %p202 = pneg %p56
      %p203 = pneg %p53
      %s204 = smul.u32 16, %s21
      %p205 = scmp.lt.s32.totalorder %s204, 15
      %s206 = scalar_select %p205, %s204, 15
      %p207 = scmp.lt.s32.totalorder %s20, 0
      %s208 = scalar_select %p207, %s20, 0
      %s209 = sadd.s32 %s208, %s206
      %s210 = smul.addr %s209, 4
      %s211 = scalar_lea.vmem %s1, %s210
      %p212 = pneg %p84
      %p213 = pneg %p81
      %p214 = scmp.lt.s32.totalorder %s20, 0
      %s215 = scalar_select %p214, %s20, 0
      %s216 = scalar_lea.vmem %s2, %s215
      %p217 = pneg %p110
      %p218 = pneg %p107
      %p219 = pneg %p138
      %p220 = pneg %p135
      %s221 = smul.u32 16, %s19
      %p222 = scmp.lt.s32.totalorder %s221, 63
      %s223 = scalar_select %p222, %s221, 63
      %p224 = scmp.lt.s32.totalorder %s20, 0
      %s225 = scalar_select %p224, %s20, 0
      %s226 = sadd.s32 %s225, %s223
      %s227 = smul.addr %s226, 8
      %s228 = scalar_lea.vmem %s3, %s227
      %s229 = smul.u32 16, %s19
      %p230 = scmp.lt.s32.totalorder %s229, 63
      %s231 = scalar_select %p230, %s229, 63
      %p232 = scmp.lt.s32.totalorder %s21, 0
      %s233 = scalar_select %p232, %s21, 0
      %s234 = sadd.s32 %s233, %s231
      %s235 = smul.addr %s234, 4
      %s236 = scalar_lea.vmem %s0, %s235
      %s237 = smul.u32 16, %s19
      %s238 = smul.u32 16, %s21
      %p239 = scmp.lt.s32.totalorder %s238, 15
      %s240 = scalar_select %p239, %s238, 15
      %p241 = scmp.lt.s32.totalorder %s20, 0
      %s242 = scalar_select %p241, %s20, 0
      %s243 = sadd.s32 %s242, %s240
      %s244 = smul.addr %s243, 4
      %s245 = scalar_lea.vmem %s1, %s244
      %s246 = smul.u32 16, %s21
      %p247 = scmp.lt.s32.totalorder %s20, 0
      %s248 = scalar_select %p247, %s20, 0
      %s249 = scalar_lea.vmem %s2, %s248
      %s250 = smul.u32 16, %s19
      %p251 = scmp.lt.s32.totalorder %s250, 63
      %s252 = scalar_select %p251, %s250, 63
      %p253 = scmp.lt.s32.totalorder %s20, 0
      %s254 = scalar_select %p253, %s20, 0
      %s255 = sadd.s32 %s254, %s252
      %s256 = smul.addr %s255, 8
      %s257 = scalar_lea.vmem %s3, %s256
      %s258 = smul.u32 16, %s19
      %v259 = vld [vmem:[%s236] sm:$0xf]
      %v260 = vld [vmem:[%s236 + $0x4] sm:$0xf]
      %v261 = vld [vmem:[%s236 + $0x8] sm:$0xf]
      %v262 = vld [vmem:[%s236 + $0xc] sm:$0xf]
      %v263 = vld [vmem:[%s236 + $0x10] sm:$0xf]
      %v264 = vld [vmem:[%s236 + $0x14] sm:$0xf]
      %v265 = vld [vmem:[%s236 + $0x18] sm:$0xf]
      %v266 = vld [vmem:[%s236 + $0x1c] sm:$0xf]
      %v267 = vld [vmem:[%s236 + $0x20] sm:$0xf]
      %v268 = vld [vmem:[%s236 + $0x24] sm:$0xf]
      %v269 = vld [vmem:[%s236 + $0x28] sm:$0xf]
      %v270 = vld [vmem:[%s236 + $0x2c] sm:$0xf]
      %v271 = vld [vmem:[%s236 + $0x30] sm:$0xf]
      %v272 = vld [vmem:[%s236 + $0x34] sm:$0xf]
      %v273 = vld [vmem:[%s236 + $0x38] sm:$0xf]
      %v274 = vld [vmem:[%s236 + $0x3c] sm:$0xf]
      %v275 = vld [vmem:[%s245] sm:$0xf]
      %v276 = vld [vmem:[%s245 + $0x4] sm:$0xf]
      %v277 = vld [vmem:[%s245 + $0x8] sm:$0xf]
      %v278 = vld [vmem:[%s245 + $0xc] sm:$0xf]
      %v279 = vld [vmem:[%s245 + $0x10] sm:$0xf]
      %v280 = vld [vmem:[%s245 + $0x14] sm:$0xf]
      %v281 = vld [vmem:[%s245 + $0x18] sm:$0xf]
      %v282 = vld [vmem:[%s245 + $0x1c] sm:$0xf]
      %v283 = vld [vmem:[%s245 + $0x20] sm:$0xf]
      %v284 = vld [vmem:[%s245 + $0x24] sm:$0xf]
      %v285 = vld [vmem:[%s245 + $0x28] sm:$0xf]
      %v286 = vld [vmem:[%s245 + $0x2c] sm:$0xf]
      %v287 = vld [vmem:[%s245 + $0x30] sm:$0xf]
      %v288 = vld [vmem:[%s245 + $0x34] sm:$0xf]
      %v289 = vld [vmem:[%s245 + $0x38] sm:$0xf]
      %v290 = vld [vmem:[%s245 + $0x3c] sm:$0xf]
      %v291 = vld [vmem:[%s249] sm:$0x1]
      %v293 = vperm.slane %v291, 0
      %v311 = vunpack.c.l.b16 %v259
      %v312 = vunpack.c.l.b16 %v260
      %v313 = vunpack.c.l.b16 %v261
      %v314 = vunpack.c.l.b16 %v262
      %v315 = vunpack.c.l.b16 %v263
      %v316 = vunpack.c.l.b16 %v264
      %v317 = vunpack.c.l.b16 %v265
      %v318 = vunpack.c.l.b16 %v266
      %v319 = vunpack.c.l.b16 %v267
      %v320 = vunpack.c.l.b16 %v268
      %v321 = vunpack.c.l.b16 %v269
      %v322 = vunpack.c.l.b16 %v270
      %v323 = vunpack.c.l.b16 %v271
      %v324 = vunpack.c.l.b16 %v272
      %v325 = vunpack.c.l.b16 %v273
      %v326 = vunpack.c.l.b16 %v274
      %v327 = vpack.c.b16 %v312, %v311
      %v328 = vpack.c.b16 %v314, %v313
      %v329 = vpack.c.b16 %v316, %v315
      %v330 = vpack.c.b16 %v318, %v317
      %v331 = vpack.c.b16 %v320, %v319
      %v332 = vpack.c.b16 %v322, %v321
      %v333 = vpack.c.b16 %v324, %v323
      %v334 = vpack.c.b16 %v326, %v325
      %v359 = vunpack.c.l.b16 %v275
      %v360 = vunpack.c.l.b16 %v276
      %v361 = vunpack.c.l.b16 %v277
      %v362 = vunpack.c.l.b16 %v278
      %v363 = vunpack.c.l.b16 %v279
      %v364 = vunpack.c.l.b16 %v280
      %v365 = vunpack.c.l.b16 %v281
      %v366 = vunpack.c.l.b16 %v282
      %v367 = vunpack.c.l.b16 %v283
      %v368 = vunpack.c.l.b16 %v284
      %v369 = vunpack.c.l.b16 %v285
      %v370 = vunpack.c.l.b16 %v286
      %v371 = vunpack.c.l.b16 %v287
      %v372 = vunpack.c.l.b16 %v288
      %v373 = vunpack.c.l.b16 %v289
      %v374 = vunpack.c.l.b16 %v290
      %v375 = vpack.c.b16 %v360, %v359
      %v376 = vpack.c.b16 %v362, %v361
      %v377 = vpack.c.b16 %v364, %v363
      %v378 = vpack.c.b16 %v366, %v365
      %v379 = vpack.c.b16 %v368, %v367
      %v380 = vpack.c.b16 %v370, %v369
      %v381 = vpack.c.b16 %v372, %v371
      %v382 = vpack.c.b16 %v374, %v373
      %391 = vmatpush.bf16.msra.mxu0 %v382
      %392 = vmatpush.bf16.msra.mxu0 %v381
      %393 = vmatpush.bf16.msra.mxu0 %v380
      %394 = vmatpush.bf16.msra.mxu0 %v379
      %395 = vmatpush.bf16.msra.mxu0 %v378
      %396 = vmatpush.bf16.msra.mxu0 %v377
      %397 = vmatpush.bf16.msra.mxu0 %v376
      %398 = vmatpush.bf16.msra.mxu0 %v375
      %399 = vmatmul.bf16.gmra.mxu0 %v327
      %v400 = vpop.f32.mrf.mxu0
      %v401 = vadd.f32 %v293, %v400
      %v402 = vpop.f32.mrf.mxu0
      %v403 = vadd.f32 %v293, %v402
      %404 = vmatmul.bf16.gmra.mxu0 %v328
      %v405 = vpop.f32.mrf.mxu0
      %v406 = vadd.f32 %v293, %v405
      %v407 = vpop.f32.mrf.mxu0
      %v408 = vadd.f32 %v293, %v407
      %409 = vmatmul.bf16.gmra.mxu0 %v329
      %v410 = vpop.f32.mrf.mxu0
      %v411 = vadd.f32 %v293, %v410
      %v412 = vpop.f32.mrf.mxu0
      %v413 = vadd.f32 %v293, %v412
      %414 = vmatmul.bf16.gmra.mxu0 %v330
      %v415 = vpop.f32.mrf.mxu0
      %v416 = vadd.f32 %v293, %v415
      %v417 = vpop.f32.mrf.mxu0
      %v418 = vadd.f32 %v293, %v417
      %419 = vmatmul.bf16.gmra.mxu0 %v331
      %v420 = vpop.f32.mrf.mxu0
      %v421 = vadd.f32 %v293, %v420
      %v422 = vpop.f32.mrf.mxu0
      %v423 = vadd.f32 %v293, %v422
      %424 = vmatmul.bf16.gmra.mxu0 %v332
      %v425 = vpop.f32.mrf.mxu0
      %v426 = vadd.f32 %v293, %v425
      %v427 = vpop.f32.mrf.mxu0
      %v428 = vadd.f32 %v293, %v427
      %429 = vmatmul.bf16.gmra.mxu0 %v333
      %v430 = vpop.f32.mrf.mxu0
      %v431 = vadd.f32 %v293, %v430
      %v432 = vpop.f32.mrf.mxu0
      %v433 = vadd.f32 %v293, %v432
      %434 = vmatmul.bf16.gmra.mxu0 %v334
      %v435 = vpop.f32.mrf.mxu0
      %v436 = vadd.f32 %v293, %v435
      %v437 = vpop.f32.mrf.mxu0
      %v438 = vadd.f32 %v293, %v437
      %439 = vdwg.mxu0
      %v440 = vtanh.pop %v401
      %v441 = vtanh.pop %v403
      %v442 = vtanh.pop %v406
      %v443 = vtanh.pop %v408
      %v444 = vtanh.pop %v411
      %v445 = vtanh.pop %v413
      %v446 = vtanh.pop %v416
      %v447 = vtanh.pop %v418
      %v448 = vtanh.pop %v421
      %v449 = vtanh.pop %v423
      %v450 = vtanh.pop %v426
      %v451 = vtanh.pop %v428
      %v452 = vtanh.pop %v431
      %v453 = vtanh.pop %v433
      %v454 = vtanh.pop %v436
      %v455 = vtanh.pop %v438
      %456 = vst [vmem:[%s257] sm:$0xff] %v440
      %457 = vst [vmem:[%s257 + $0x8] sm:$0xff] %v441
      %458 = vst [vmem:[%s257 + $0x10] sm:$0xff] %v442
      %459 = vst [vmem:[%s257 + $0x18] sm:$0xff] %v443
      %460 = vst [vmem:[%s257 + $0x20] sm:$0xff] %v444
      %461 = vst [vmem:[%s257 + $0x28] sm:$0xff] %v445
      %462 = vst [vmem:[%s257 + $0x30] sm:$0xff] %v446
      %463 = vst [vmem:[%s257 + $0x38] sm:$0xff] %v447
      %464 = vst [vmem:[%s257 + $0x40] sm:$0xff] %v448
      %465 = vst [vmem:[%s257 + $0x48] sm:$0xff] %v449
      %466 = vst [vmem:[%s257 + $0x50] sm:$0xff] %v450
      %467 = vst [vmem:[%s257 + $0x58] sm:$0xff] %v451
      %468 = vst [vmem:[%s257 + $0x60] sm:$0xff] %v452
      %469 = vst [vmem:[%s257 + $0x68] sm:$0xff] %v453
      %470 = vst [vmem:[%s257 + $0x70] sm:$0xff] %v454
      %471 = vst [vmem:[%s257 + $0x78] sm:$0xff] %v455
      %s472 = smul.u32 16, %s19
      %p473 = scmp.lt.s32.totalorder %s472, 63
      %s474 = scalar_select %p473, %s472, 63
      %p475 = scmp.lt.s32.totalorder %s20, 0
      %s476 = scalar_select %p475, %s20, 0
      %s477 = sadd.s32 %s476, %s474
      %s478 = smul.addr %s477, 8
      %s479 = scalar_lea.vmem %s3, %s478
      // Predicated region
      $region33: #{_lambda_.9} parent=31 // pred_check
        %p480 = pneg %p135
      $region34: #{_lambda_.9} parent=31 // pred_check_branch
        %482 = sbr.rel (%p480) target = $region36
      $region35: #{_lambda_.9} parent=31 // pred_region
        %s483 = smul.u32 16, %s19
      $region36: #{_lambda_.9} parent=31 // pred_fallthru
        _
    $region32: #{_lambda_.9} parent=5 // pred_fallthru
      _
    %p484 = scmp.le.s32.totalorder 2, %s9
    // Predicated region
    $region37: #{_lambda_.9} parent=5 // pred_check
      %p485 = pneg %p484
    $region38: #{_lambda_.9} parent=5 // pred_check_branch
      %487 = sbr.rel (%p485) target = $region40
    $region39: #{_lambda_.9} parent=5 // pred_region
      %s488 = ssub.s32 %s9, 2
      // Predicated region
      $region41: #{_lambda_.9} parent=39 // pred_check
        %p489 = pneg %p141
      $region42: #{_lambda_.9} parent=39 // pred_check_branch
        %491 = sbr.rel (%p489) target = $region44
      $region43: #{_lambda_.9} parent=39 // pred_region
        %s492 = smul.u32 16, %s22
        %p493 = scmp.lt.s32.totalorder %s492, 63
        %s494 = scalar_select %p493, %s492, 63
        %p495 = scmp.lt.s32.totalorder %s23, 0
        %s496 = scalar_select %p495, %s23, 0
        %s497 = sadd.s32 %s496, %s494
        %s498 = smul.addr %s497, 8
        %s499 = scalar_lea.vmem %s3, %s498
      $region44: #{_lambda_.9} parent=39 // pred_fallthru
        _
    $region40: #{_lambda_.9} parent=5 // pred_fallthru
      _
  $region6: #{_lambda_.9} parent=0 // loop_footer
    %s13 = sadd.s32 1, %s9
  $region7: #{_lambda_.9} parent=0 // loop_footer_branch
    %8 = sbr.rel target = $region3
  $region8: #{_lambda_.9} parent=0 // loop_exit
    _

</llo_original>
